<compile_context>
chip_gen: v7x
topology: tpu7x:2x2x1
jax: 0.10.0
libtpu: 0.0.40
codegen_flags: <defaults>
</compile_context>

<pallas_src>
import functools

import jax
import jax.numpy as jnp
from jax.experimental import pallas as pl
from jax.experimental.pallas import tpu as pltpu


# ----------------------------------------------------------------------------
# Small helpers.
# ----------------------------------------------------------------------------
def _vmem_limit_bytes():
    """Generation-aware VMEM limit: leave headroom on 64 MiB parts (v7x),
    use the space on 128 MiB parts (v5e/v6e)."""
    cap = 128 << 20
    try:
        info = pltpu.get_tpu_info()
        for attr in ("vmem_capacity_bytes", "vmem_size_bytes", "vmem_bytes"):
            v = getattr(info, attr, None)
            if v:
                cap = int(v)
                break
    except Exception:
        pass
    if cap <= (64 << 20):
        return 48 << 20
    return 100 << 20


def _resident_spec(shape, pipeline_mode):
    """BlockSpec for an operand that stays resident in VMEM (constant block)."""
    index_map = lambda *_: (0,) * len(shape)
    if pipeline_mode is None:
        return pl.BlockSpec(shape, index_map)
    return pl.BlockSpec(shape, index_map, pipeline_mode=pipeline_mode)


_BUFFERED_WEIGHTS_OK = {}


def _call_with_resident_weights(key, make_call, args):
    """Prefer single-buffered (pl.Buffered(1)) resident weights; fall back to
    default double-buffering if this JAX/Mosaic build rejects pipeline_mode."""
    ok = _BUFFERED_WEIGHTS_OK.get(key)
    if ok is None:
        try:
            out = make_call(pl.Buffered(1))(*args)
            jax.block_until_ready(out)
            _BUFFERED_WEIGHTS_OK[key] = True
            return out
        except Exception:
            _BUFFERED_WEIGHTS_OK[key] = False
            return make_call(None)(*args)
    if ok:
        return make_call(pl.Buffered(1))(*args)
    return make_call(None)(*args)


def _sigmoid(x, approx):
    # exp(-x) goes to the EUP slot; the reciprocal can stay there too
    # (approx=True) instead of occupying a VALU divide.
    e = jnp.exp(-x)
    return pl.reciprocal(1.0 + e, approx=approx)


# ----------------------------------------------------------------------------
# One-time parameter preparation (hoisted out of the per-step forward).
# ----------------------------------------------------------------------------
def prepare_params(params, weights_dtype=jnp.float32):
    """Stack / transpose the 11 nn.Linear weights into fused matrices ONCE.

    Returns a dict with:
      wx   : (D_in, 4H) x-path weights for gates (i, f, g, o).
      wh   : (H, 4H)    h-path weights for gates (i, f, g, o).
      wc   : (H, 2H)    c-path (peephole) weights for gates (i, f) only.
      woc  : (H, H)     output_c weight, applied to next_c inside the kernel.
      bias : (1, 4H)    all per-gate biases folded together (kept in f32).
    """
    H = params["input_h_w"].shape[0]
    T = lambda w: jnp.transpose(w)

    wx = jnp.concatenate([T(params["input_x_w"]), T(params["forget_x_w"]),
                          T(params["memory_x_w"]), T(params["output_x_w"])], axis=1)
    wh = jnp.concatenate([T(params["input_h_w"]), T(params["forget_h_w"]),
                          T(params["memory_h_w"]), T(params["output_h_w"])], axis=1)
    wc = jnp.concatenate([T(params["input_c_w"]), T(params["forget_c_w"])], axis=1)

    bias = jnp.concatenate(
        [params["input_x_b"] + params["input_h_b"] + params["input_c_b"],
         params["forget_x_b"] + params["forget_h_b"] + params["forget_c_b"],
         params["memory_x_b"] + params["memory_h_b"],
         params["output_x_b"] + params["output_h_b"] + params["output_c_b"]],
        axis=0).astype(jnp.float32).reshape(1, 4 * H)

    return {
        "wx": wx.astype(weights_dtype),                         # (D_in, 4H)
        "wh": wh.astype(weights_dtype),                         # (H, 4H)
        "wc": wc.astype(weights_dtype),                         # (H, 2H)
        "woc": T(params["output_c_w"]).astype(weights_dtype),   # (H, H)
        "bias": bias,                                           # (1, 4H) f32
        "hidden_size": H,
        "input_size": wx.shape[0],
    }


# ----------------------------------------------------------------------------
# Single-step kernel (matches the module's forward exactly).
# ----------------------------------------------------------------------------
def _glstm_step_kernel(x_ref, h_ref, c_ref, wx_ref, wh_ref, wc_ref, woc_ref,
                       bias_ref, h_out_ref, c_out_ref, *, hidden_size,
                       approx_sigmoid):
    H = hidden_size
    wx = wx_ref[...]
    wh = wh_ref[...]
    wc = wc_ref[...]
    woc = woc_ref[...]
    wdt = wx.dtype

    x = x_ref[...].astype(wdt)
    h = h_ref[...].astype(wdt)
    c = c_ref[...].astype(jnp.float32)

    # Gate pre-activations: x-path + h-path in one f32 accumulator; the
    # peephole c-path only feeds the i/f gates (dense (H, 2H) matmul, no
    # wasted zero columns).
    z = (jnp.dot(x, wx, preferred_element_type=jnp.float32)
         + jnp.dot(h, wh, preferred_element_type=jnp.float32)
         + bias_ref[...])                                     # (tb, 4H)
    zc = jnp.dot(c.astype(wdt), wc, preferred_element_type=jnp.float32)  # (tb, 2H)

    # NOTE: H must be a multiple of 128 so gate extraction is a free
    # lane-aligned static view (asserted in the wrapper).
    i_gate = _sigmoid(z[:, 0 * H:1 * H] + zc[:, 0:H], approx_sigmoid)
    f_gate = _sigmoid(z[:, 1 * H:2 * H] + zc[:, H:2 * H], approx_sigmoid)
    g_gate = jnp.tanh(z[:, 2 * H:3 * H])

    next_c = f_gate * c + i_gate * g_gate                     # (tb, H) f32

    zoc = jnp.dot(next_c.astype(wdt), woc, preferred_element_type=jnp.float32)
    o_gate = _sigmoid(z[:, 3 * H:4 * H] + zoc, approx_sigmoid)
    next_h = o_gate * next_c

    h_out_ref[...] = next_h.astype(h_out_ref.dtype)
    c_out_ref[...] = next_c.astype(c_out_ref.dtype)


def glstm_step(x, h, c, prepped, *, block_b=256, approx_sigmoid=False):
    """One G_LSTM step. Returns (next_h, next_c)."""
    B, D_in = x.shape
    H = prepped["hidden_size"]
    assert H % 128 == 0, "hidden_size must be a multiple of 128 (lane-aligned gates)"
    assert B % 8 == 0, "batch must be a multiple of 8 (sublane-aligned)"

    tb = B if B <= block_b else block_b
    grid = (pl.cdiv(B, tb),)

    kernel = functools.partial(_glstm_step_kernel, hidden_size=H,
                               approx_sigmoid=approx_sigmoid)

    def make_call(pm):
        return pl.pallas_call(
            kernel,
            out_shape=(jax.ShapeDtypeStruct((B, H), x.dtype),
                       jax.ShapeDtypeStruct((B, H), x.dtype)),
            grid=grid,
            in_specs=[
                pl.BlockSpec((tb, D_in), lambda b: (b, 0)),    # x (streamed)
                pl.BlockSpec((tb, H), lambda b: (b, 0)),       # h (streamed)
                pl.BlockSpec((tb, H), lambda b: (b, 0)),       # c (streamed, once)
                _resident_spec((D_in, 4 * H), pm),             # wx  (resident)
                _resident_spec((H, 4 * H), pm),                # wh  (resident)
                _resident_spec((H, 2 * H), pm),                # wc  (resident)
                _resident_spec((H, H), pm),                    # woc (resident)
                _resident_spec((1, 4 * H), pm),                # bias (resident)
            ],
            out_specs=(pl.BlockSpec((tb, H), lambda b: (b, 0)),
                       pl.BlockSpec((tb, H), lambda b: (b, 0))),
            compiler_params=pltpu.CompilerParams(
                dimension_semantics=("parallel",),
                vmem_limit_bytes=_vmem_limit_bytes()),
        )

    args = (x, h, c, prepped["wx"], prepped["wh"], prepped["wc"],
            prepped["woc"], prepped["bias"])
    return _call_with_resident_weights("step", make_call, args)


# ----------------------------------------------------------------------------
# Sequence kernel: x-projection hoisted out, time axis blocked, weights
# resident in VMEM across all timesteps, h/c carried in VMEM scratch.
# ----------------------------------------------------------------------------
def _glstm_seq_kernel(zx_ref, h0_ref, c0_ref, wh_ref, wc_ref, woc_ref,
                      h_seq_ref, c_fin_ref, hc_ref, *, hidden_size, time_block,
                      approx_sigmoid):
    H = hidden_size
    tblk = pl.program_id(1)

    @pl.when(tblk == 0)
    def _():
        hc_ref[:, 0:H] = h0_ref[...].astype(jnp.float32)
        hc_ref[:, H:2 * H] = c0_ref[...].astype(jnp.float32)

    wh = wh_ref[...]
    wc = wc_ref[...]
    woc = woc_ref[...]
    wdt = wh.dtype

    def step(tt, carry):
        h, c = carry
        # x-path + bias were precomputed (zx); only the recurrent matmuls stay.
        z = zx_ref[tt] + jnp.dot(h.astype(wdt), wh,
                                 preferred_element_type=jnp.float32)    # (tb, 4H)
        zc = jnp.dot(c.astype(wdt), wc, preferred_element_type=jnp.float32)  # (tb, 2H)

        i_gate = _sigmoid(z[:, 0 * H:1 * H] + zc[:, 0:H], approx_sigmoid)
        f_gate = _sigmoid(z[:, 1 * H:2 * H] + zc[:, H:2 * H], approx_sigmoid)
        g_gate = jnp.tanh(z[:, 2 * H:3 * H])
        next_c = f_gate * c + i_gate * g_gate

        zoc = jnp.dot(next_c.astype(wdt), woc, preferred_element_type=jnp.float32)
        o_gate = _sigmoid(z[:, 3 * H:4 * H] + zoc, approx_sigmoid)
        next_h = o_gate * next_c

        h_seq_ref[tt] = next_h.astype(h_seq_ref.dtype)
        return next_h, next_c

    h_init = hc_ref[:, 0:H]
    c_init = hc_ref[:, H:2 * H]
    h_fin, c_fin = jax.lax.fori_loop(0, time_block, step, (h_init, c_init),
                                     unroll=True)

    # Carry state to the next time block.
    hc_ref[:, 0:H] = h_fin
    hc_ref[:, H:2 * H] = c_fin
    c_fin_ref[...] = c_fin.astype(c_fin_ref.dtype)   # resident; written back at end


def glstm_sequence(x_seq, h0, c0, prepped, *, time_block=8, block_b=256,
                   approx_sigmoid=False):
    """Run the cell over x_seq (T, B, D_in). Returns ((h_T, c_T), h_seq)."""
    T_, B, D_in = x_seq.shape
    H = prepped["hidden_size"]
    assert H % 128 == 0, "hidden_size must be a multiple of 128 (lane-aligned gates)"
    assert B % 8 == 0, "batch must be a multiple of 8 (sublane-aligned)"

    # --- Hoist the x-path projection (and all biases) out of the recurrence:
    # one large, fully-utilized MXU matmul instead of T degenerate M=B calls.
    wx = prepped["wx"]
    zx = (jnp.dot(x_seq.reshape(T_ * B, D_in).astype(wx.dtype), wx,
                  preferred_element_type=jnp.float32)
          + prepped["bias"]).reshape(T_, B, 4 * H)            # f32 (T, B, 4H)

    # --- Time blocking: TT timesteps per grid iteration (must divide T so the
    # recurrence carry stays exact).
    TT = max(1, min(time_block, T_))
    while T_ % TT:
        TT -= 1

    tb = B if B <= block_b else block_b
    grid = (pl.cdiv(B, tb), T_ // TT)

    kernel = functools.partial(_glstm_seq_kernel, hidden_size=H, time_block=TT,
                               approx_sigmoid=approx_sigmoid)

    def make_call(pm):
        return pl.pallas_call(
            kernel,
            out_shape=(jax.ShapeDtypeStruct((T_, B, H), x_seq.dtype),
                       jax.ShapeDtypeStruct((B, H), x_seq.dtype)),
            grid=grid,
            in_specs=[
                pl.BlockSpec((TT, tb, 4 * H), lambda b, t: (t, b, 0)),  # z_x block
                pl.BlockSpec((tb, H), lambda b, t: (b, 0)),             # h0
                pl.BlockSpec((tb, H), lambda b, t: (b, 0)),             # c0
                _resident_spec((H, 4 * H), pm),                         # wh  (resident)
                _resident_spec((H, 2 * H), pm),                         # wc  (resident)
                _resident_spec((H, H), pm),                             # woc (resident)
            ],
            out_specs=(
                pl.BlockSpec((TT, tb, H), lambda b, t: (t, b, 0)),      # h per step
                pl.BlockSpec((tb, H), lambda b, t: (b, 0)),             # final c
            ),
            scratch_shapes=[pltpu.VMEM((tb, 2 * H), jnp.float32)],      # [h | c] carry
            compiler_params=pltpu.CompilerParams(
                dimension_semantics=("parallel", "arbitrary"),
                vmem_limit_bytes=_vmem_limit_bytes()),
        )

    args = (zx, h0, c0, prepped["wh"], prepped["wc"], prepped["woc"])
    h_seq, c_fin = _call_with_resident_weights("seq", make_call, args)

    h_fin = h_seq[-1]
    return (h_fin, c_fin), h_seq


# ----------------------------------------------------------------------------
# Reference + init (pure JAX, matches the PyTorch module exactly).
# ----------------------------------------------------------------------------
def init_params(key, input_size, hidden_size, dtype=jnp.float32):
    """Deterministic init mimicking nn.Linear default (uniform +/- 1/sqrt(fan_in))."""
    names_x = ["input_x", "forget_x", "output_x", "memory_x"]
    names_h = ["input_h", "forget_h", "output_h", "memory_h"]
    names_c = ["input_c", "forget_c", "output_c"]
    params = {}
    keys = jax.random.split(key, 2 * (len(names_x) + len(names_h) + len(names_c)))
    ki = 0
    for name in names_x:
        bound = 1.0 / jnp.sqrt(input_size)
        params[name + "_w"] = jax.random.uniform(
            keys[ki], (hidden_size, input_size), dtype, -bound, bound); ki += 1
        params[name + "_b"] = jax.random.uniform(
            keys[ki], (hidden_size,), dtype, -bound, bound); ki += 1
    for name in names_h + names_c:
        bound = 1.0 / jnp.sqrt(hidden_size)
        params[name + "_w"] = jax.random.uniform(
            keys[ki], (hidden_size, hidden_size), dtype, -bound, bound); ki += 1
        params[name + "_b"] = jax.random.uniform(
            keys[ki], (hidden_size,), dtype, -bound, bound); ki += 1
    return params


def glstm_reference(x, h, c, p):
    lin = lambda v, w, b: v @ w.T + b
    i = jax.nn.sigmoid(lin(x, p["input_x_w"], p["input_x_b"])
                       + lin(h, p["input_h_w"], p["input_h_b"])
                       + lin(c, p["input_c_w"], p["input_c_b"]))
    f = jax.nn.sigmoid(lin(x, p["forget_x_w"], p["forget_x_b"])
                       + lin(h, p["forget_h_w"], p["forget_h_b"])
                       + lin(c, p["forget_c_w"], p["forget_c_b"]))
    g = jnp.tanh(lin(x, p["memory_x_w"], p["memory_x_b"])
                 + lin(h, p["memory_h_w"], p["memory_h_b"]))
    next_c = f * c + i * g
    o = jax.nn.sigmoid(lin(x, p["output_x_w"], p["output_x_b"])
                       + lin(h, p["output_h_w"], p["output_h_b"])
                       + lin(next_c, p["output_c_w"], p["output_c_b"]))
    next_h = o * next_c
    return next_h, next_c


if __name__ == "__main__":
    # Small shapes consistent with the module (input_size=2048, hidden=512 scaled
    # down): batch=8, input_size=256, hidden_size=128, seq=8.
    B, D_IN, H, T_STEPS = 8, 256, 128, 8

    key = jax.random.PRNGKey(0)
    kx, kh, kc, kp, ks = jax.random.split(key, 5)
    x = jax.random.normal(kx, (B, D_IN), jnp.float32)
    h0 = jax.random.normal(kh, (B, H), jnp.float32)
    c0 = jax.random.normal(kc, (B, H), jnp.float32)
    x_seq = jax.random.normal(ks, (T_STEPS, B, D_IN), jnp.float32)
    params = init_params(kp, D_IN, H)

    # --- single step, f32 weights ------------------------------------------
    prepped = prepare_params(params, weights_dtype=jnp.float32)
    h1, c1 = glstm_step(x, h0, c0, prepped)
    jax.block_until_ready((h1, c1))
    h_ref, c_ref = glstm_reference(x, h0, c0, params)
    assert jnp.allclose(h1, h_ref, atol=1e-5, rtol=1e-5), "h mismatch (f32)"
    assert jnp.allclose(c1, c_ref, atol=1e-5, rtol=1e-5), "c mismatch (f32)"

    # --- single step, bf16 weights (halved weight bytes, f32 accumulation) --
    prepped_bf16 = prepare_params(params, weights_dtype=jnp.bfloat16)
    h1b, c1b = glstm_step(x, h0, c0, prepped_bf16)
    jax.block_until_ready((h1b, c1b))
    assert jnp.allclose(h1b, h_ref, atol=1e-1, rtol=1e-1), "h mismatch (bf16)"
    assert jnp.allclose(c1b, c_ref, atol=1e-1, rtol=1e-1), "c mismatch (bf16)"

    # --- multi-step sequence: hoisted x-projection, blocked time axis,
    #     weights resident in VMEM across timesteps ---------------------------
    (hT, cT), h_seq = glstm_sequence(x_seq, h0, c0, prepped, time_block=4)
    jax.block_until_ready((hT, cT, h_seq))

    def scan_ref(xs, h_init, c_init, p):
        def step(carry, xt):
            hh, cc = glstm_reference(xt, carry[0], carry[1], p)
            return (hh, cc), hh
        (h_last, c_last), hs = jax.lax.scan(step, (h_init, c_init), xs)
        return h_last, c_last, hs

    hT_r, cT_r, h_seq_r = scan_ref(x_seq, h0, c0, params)
    assert jnp.allclose(h_seq, h_seq_r, atol=1e-4, rtol=1e-4), "h_seq mismatch"
    assert jnp.allclose(hT, hT_r, atol=1e-4, rtol=1e-4), "h_T mismatch"
    assert jnp.allclose(cT, cT_r, atol=1e-4, rtol=1e-4), "c_T mismatch"

    print("KERNEL_OK")
</pallas_src>

<mosaic_0001>
module attributes {stable_mosaic.version = 11 : i64} {
  func.func @_glstm_step_kernel(%arg0: i32, %arg1: memref<8x256xf32, #tpu.memory_space<vmem>>, %arg2: memref<8x128xf32, #tpu.memory_space<vmem>>, %arg3: memref<8x128xf32, #tpu.memory_space<vmem>>, %arg4: memref<256x512xf32, #tpu.memory_space<vmem>>, %arg5: memref<128x512xf32, #tpu.memory_space<vmem>>, %arg6: memref<128x256xf32, #tpu.memory_space<vmem>>, %arg7: memref<128x128xf32, #tpu.memory_space<vmem>>, %arg8: memref<1x512xf32, #tpu.memory_space<vmem>>, %arg9: memref<8x128xf32, #tpu.memory_space<vmem>>, %arg10: memref<8x128xf32, #tpu.memory_space<vmem>>) attributes {dimension_semantics = [#tpu.dimension_semantics<parallel>], iteration_bounds = array<i64: 1>, scalar_prefetch = 0 : i64, scratch_operands = 0 : i64, tpu.core_type = #tpu.core_type<tc>, window_params = [{transform_indices = @transform_0, window_bounds = array<i64: 8, 256>}, {transform_indices = @transform_1, window_bounds = array<i64: 8, 128>}, {transform_indices = @transform_2, window_bounds = array<i64: 8, 128>}, {pipeline_mode = #tpu.pipeline_mode<synchronous>, transform_indices = @transform_3, window_bounds = array<i64: 256, 512>}, {pipeline_mode = #tpu.pipeline_mode<synchronous>, transform_indices = @transform_4, window_bounds = array<i64: 128, 512>}, {pipeline_mode = #tpu.pipeline_mode<synchronous>, transform_indices = @transform_5, window_bounds = array<i64: 128, 256>}, {pipeline_mode = #tpu.pipeline_mode<synchronous>, transform_indices = @transform_6, window_bounds = array<i64: 128, 128>}, {pipeline_mode = #tpu.pipeline_mode<synchronous>, transform_indices = @transform_7, window_bounds = array<i64: 1, 512>}, {transform_indices = @transform_8, window_bounds = array<i64: 8, 128>}, {transform_indices = @transform_9, window_bounds = array<i64: 8, 128>}]} {
    %c0 = arith.constant 0 : index
    %c0_0 = arith.constant 0 : index
    %0 = vector.load %arg4[%c0, %c0_0] : memref<256x512xf32, #tpu.memory_space<vmem>>, vector<256x512xf32>
    %c0_1 = arith.constant 0 : index
    %c0_2 = arith.constant 0 : index
    %1 = vector.load %arg5[%c0_1, %c0_2] : memref<128x512xf32, #tpu.memory_space<vmem>>, vector<128x512xf32>
    %c0_3 = arith.constant 0 : index
    %c0_4 = arith.constant 0 : index
    %2 = vector.load %arg6[%c0_3, %c0_4] : memref<128x256xf32, #tpu.memory_space<vmem>>, vector<128x256xf32>
    %c0_5 = arith.constant 0 : index
    %c0_6 = arith.constant 0 : index
    %3 = vector.load %arg7[%c0_5, %c0_6] : memref<128x128xf32, #tpu.memory_space<vmem>>, vector<128x128xf32>
    %c0_7 = arith.constant 0 : index
    %c0_8 = arith.constant 0 : index
    %4 = vector.load %arg1[%c0_7, %c0_8] : memref<8x256xf32, #tpu.memory_space<vmem>>, vector<8x256xf32>
    %c0_9 = arith.constant 0 : index
    %c0_10 = arith.constant 0 : index
    %5 = vector.load %arg2[%c0_9, %c0_10] : memref<8x128xf32, #tpu.memory_space<vmem>>, vector<8x128xf32>
    %c0_11 = arith.constant 0 : index
    %c0_12 = arith.constant 0 : index
    %6 = vector.load %arg3[%c0_11, %c0_12] : memref<8x128xf32, #tpu.memory_space<vmem>>, vector<8x128xf32>
    %cst = arith.constant dense<0.000000e+00> : vector<8x512xf32>
    %7 = tpu.matmul %4, %0, %cst {dimension_numbers = #tpu.dot_dimension_numbers<[1], [0], [0], [1], [0, 0, 1, 1], [], []>} : vector<8x256xf32>, vector<256x512xf32>, vector<8x512xf32> -> vector<8x512xf32>
    %cst_13 = arith.constant dense<0.000000e+00> : vector<8x512xf32>
    %8 = tpu.matmul %5, %1, %cst_13 {dimension_numbers = #tpu.dot_dimension_numbers<[1], [0], [0], [1], [0, 0, 1, 1], [], []>} : vector<8x128xf32>, vector<128x512xf32>, vector<8x512xf32> -> vector<8x512xf32>
    %9 = arith.addf %7, %8 : vector<8x512xf32>
    %c0_14 = arith.constant 0 : index
    %c0_15 = arith.constant 0 : index
    %10 = vector.load %arg8[%c0_14, %c0_15] : memref<1x512xf32, #tpu.memory_space<vmem>>, vector<1x512xf32>
    %11 = vector.broadcast %10 : vector<1x512xf32> to vector<8x512xf32>
    %12 = arith.addf %9, %11 : vector<8x512xf32>
    %cst_16 = arith.constant dense<0.000000e+00> : vector<8x256xf32>
    %13 = tpu.matmul %6, %2, %cst_16 {dimension_numbers = #tpu.dot_dimension_numbers<[1], [0], [0], [1], [0, 0, 1, 1], [], []>} : vector<8x128xf32>, vector<128x256xf32>, vector<8x256xf32> -> vector<8x256xf32>
    %14 = vector.extract_strided_slice %12 {offsets = [0, 0], sizes = [8, 128], strides = [1, 1]} : vector<8x512xf32> to vector<8x128xf32>
    %15 = vector.extract_strided_slice %13 {offsets = [0, 0], sizes = [8, 128], strides = [1, 1]} : vector<8x256xf32> to vector<8x128xf32>
    %16 = arith.addf %14, %15 : vector<8x128xf32>
    %cst_17 = arith.constant 0.000000e+00 : f32
    %17 = vector.broadcast %cst_17 : f32 to vector<8x128xf32>
    %18 = arith.subf %17, %16 : vector<8x128xf32>
    %19 = math.exp %18 : vector<8x128xf32>
    %cst_18 = arith.constant 1.000000e+00 : f32
    %20 = vector.broadcast %cst_18 : f32 to vector<8x128xf32>
    %21 = arith.addf %20, %19 : vector<8x128xf32>
    %22 = tpu.reciprocal %21 : vector<8x128xf32> -> vector<8x128xf32>
    %23 = vector.extract_strided_slice %12 {offsets = [0, 128], sizes = [8, 128], strides = [1, 1]} : vector<8x512xf32> to vector<8x128xf32>
    %24 = vector.extract_strided_slice %13 {offsets = [0, 128], sizes = [8, 128], strides = [1, 1]} : vector<8x256xf32> to vector<8x128xf32>
    %25 = arith.addf %23, %24 : vector<8x128xf32>
    %cst_19 = arith.constant 0.000000e+00 : f32
    %26 = vector.broadcast %cst_19 : f32 to vector<8x128xf32>
    %27 = arith.subf %26, %25 : vector<8x128xf32>
    %28 = math.exp %27 : vector<8x128xf32>
    %cst_20 = arith.constant 1.000000e+00 : f32
    %29 = vector.broadcast %cst_20 : f32 to vector<8x128xf32>
    %30 = arith.addf %29, %28 : vector<8x128xf32>
    %31 = tpu.reciprocal %30 : vector<8x128xf32> -> vector<8x128xf32>
    %32 = vector.extract_strided_slice %12 {offsets = [0, 256], sizes = [8, 128], strides = [1, 1]} : vector<8x512xf32> to vector<8x128xf32>
    %33 = math.tanh %32 : vector<8x128xf32>
    %34 = arith.mulf %31, %6 : vector<8x128xf32>
    %35 = arith.mulf %22, %33 : vector<8x128xf32>
    %36 = arith.addf %34, %35 : vector<8x128xf32>
    %cst_21 = arith.constant dense<0.000000e+00> : vector<8x128xf32>
    %37 = tpu.matmul %36, %3, %cst_21 {dimension_numbers = #tpu.dot_dimension_numbers<[1], [0], [0], [1], [0, 0, 1, 1], [], []>} : vector<8x128xf32>, vector<128x128xf32>, vector<8x128xf32> -> vector<8x128xf32>
    %38 = vector.extract_strided_slice %12 {offsets = [0, 384], sizes = [8, 128], strides = [1, 1]} : vector<8x512xf32> to vector<8x128xf32>
    %39 = arith.addf %38, %37 : vector<8x128xf32>
    %cst_22 = arith.constant 0.000000e+00 : f32
    %40 = vector.broadcast %cst_22 : f32 to vector<8x128xf32>
    %41 = arith.subf %40, %39 : vector<8x128xf32>
    %42 = math.exp %41 : vector<8x128xf32>
    %cst_23 = arith.constant 1.000000e+00 : f32
    %43 = vector.broadcast %cst_23 : f32 to vector<8x128xf32>
    %44 = arith.addf %43, %42 : vector<8x128xf32>
    %45 = tpu.reciprocal %44 : vector<8x128xf32> -> vector<8x128xf32>
    %46 = arith.mulf %45, %36 : vector<8x128xf32>
    %c0_24 = arith.constant 0 : index
    %c0_25 = arith.constant 0 : index
    %47 = vector.load %arg9[%c0_24, %c0_25] : memref<8x128xf32, #tpu.memory_space<vmem>>, vector<8x128xf32>
    tpu.vector_store %arg9[%c0_24, %c0_25], %46 {strides = array<i32>} : memref<8x128xf32, #tpu.memory_space<vmem>>, vector<8x128xf32>,
    %c0_26 = arith.constant 0 : index
    %c0_27 = arith.constant 0 : index
    %48 = vector.load %arg10[%c0_26, %c0_27] : memref<8x128xf32, #tpu.memory_space<vmem>>, vector<8x128xf32>
    tpu.vector_store %arg10[%c0_26, %c0_27], %36 {strides = array<i32>} : memref<8x128xf32, #tpu.memory_space<vmem>>, vector<8x128xf32>,
    return
  }
  func.func @transform_0(%arg0: i32) -> (i32, i32) {
    %c0_i32 = arith.constant 0 : i32
    %c0_i32_0 = arith.constant 0 : i32
    return %arg0, %c0_i32 : i32, i32
  }
  func.func @transform_1(%arg0: i32) -> (i32, i32) {
    %c0_i32 = arith.constant 0 : i32
    %c0_i32_0 = arith.constant 0 : i32
    return %arg0, %c0_i32 : i32, i32
  }
  func.func @transform_2(%arg0: i32) -> (i32, i32) {
    %c0_i32 = arith.constant 0 : i32
    %c0_i32_0 = arith.constant 0 : i32
    return %arg0, %c0_i32 : i32, i32
  }
  func.func @transform_3(%arg0: i32) -> (i32, i32) {
    %c0_i32 = arith.constant 0 : i32
    %c0_i32_0 = arith.constant 0 : i32
    %c0_i32_1 = arith.constant 0 : i32
    return %c0_i32, %c0_i32_0 : i32, i32
  }
  func.func @transform_4(%arg0: i32) -> (i32, i32) {
    %c0_i32 = arith.constant 0 : i32
    %c0_i32_0 = arith.constant 0 : i32
    %c0_i32_1 = arith.constant 0 : i32
    return %c0_i32, %c0_i32_0 : i32, i32
  }
  func.func @transform_5(%arg0: i32) -> (i32, i32) {
    %c0_i32 = arith.constant 0 : i32
    %c0_i32_0 = arith.constant 0 : i32
    %c0_i32_1 = arith.constant 0 : i32
    return %c0_i32, %c0_i32_0 : i32, i32
  }
  func.func @transform_6(%arg0: i32) -> (i32, i32) {
    %c0_i32 = arith.constant 0 : i32
    %c0_i32_0 = arith.constant 0 : i32
    %c0_i32_1 = arith.constant 0 : i32
    return %c0_i32, %c0_i32_0 : i32, i32
  }
  func.func @transform_7(%arg0: i32) -> (i32, i32) {
    %c0_i32 = arith.constant 0 : i32
    %c0_i32_0 = arith.constant 0 : i32
    %c0_i32_1 = arith.constant 0 : i32
    return %c0_i32, %c0_i32_0 : i32, i32
  }
  func.func @transform_8(%arg0: i32) -> (i32, i32) {
    %c0_i32 = arith.constant 0 : i32
    %c0_i32_0 = arith.constant 0 : i32
    return %arg0, %c0_i32 : i32, i32
  }
  func.func @transform_9(%arg0: i32) -> (i32, i32) {
    %c0_i32 = arith.constant 0 : i32
    %c0_i32_0 = arith.constant 0 : i32
    return %arg0, %c0_i32 : i32, i32
  }
}

module attributes {stable_mosaic.version = 11 : i64} {
  func.func @_glstm_step_kernel(%arg0: i32, %arg1: memref<8x256xf32, #tpu.memory_space<vmem>>, %arg2: memref<8x128xf32, #tpu.memory_space<vmem>>, %arg3: memref<8x128xf32, #tpu.memory_space<vmem>>, %arg4: memref<256x512xf32, #tpu.memory_space<vmem>>, %arg5: memref<128x512xf32, #tpu.memory_space<vmem>>, %arg6: memref<128x256xf32, #tpu.memory_space<vmem>>, %arg7: memref<128x128xf32, #tpu.memory_space<vmem>>, %arg8: memref<1x512xf32, #tpu.memory_space<vmem>>, %arg9: memref<8x128xf32, #tpu.memory_space<vmem>>, %arg10: memref<8x128xf32, #tpu.memory_space<vmem>>) attributes {dimension_semantics = [#tpu.dimension_semantics<parallel>], iteration_bounds = array<i64: 1>, scalar_prefetch = 0 : i64, scratch_operands = 0 : i64, tpu.core_type = #tpu.core_type<tc>, window_params = [{transform_indices = @transform_0, window_bounds = array<i64: 8, 256>}, {transform_indices = @transform_1, window_bounds = array<i64: 8, 128>}, {transform_indices = @transform_2, window_bounds = array<i64: 8, 128>}, {pipeline_mode = #tpu.pipeline_mode<synchronous>, transform_indices = @transform_3, window_bounds = array<i64: 256, 512>}, {pipeline_mode = #tpu.pipeline_mode<synchronous>, transform_indices = @transform_4, window_bounds = array<i64: 128, 512>}, {pipeline_mode = #tpu.pipeline_mode<synchronous>, transform_indices = @transform_5, window_bounds = array<i64: 128, 256>}, {pipeline_mode = #tpu.pipeline_mode<synchronous>, transform_indices = @transform_6, window_bounds = array<i64: 128, 128>}, {pipeline_mode = #tpu.pipeline_mode<synchronous>, transform_indices = @transform_7, window_bounds = array<i64: 1, 512>}, {transform_indices = @transform_8, window_bounds = array<i64: 8, 128>}, {transform_indices = @transform_9, window_bounds = array<i64: 8, 128>}]} {
    %c0 = arith.constant 0 : index
    %c0_0 = arith.constant 0 : index
    %0 = vector.load %arg4[%c0, %c0_0] : memref<256x512xf32, #tpu.memory_space<vmem>>, vector<256x512xf32>
    %c0_1 = arith.constant 0 : index
    %c0_2 = arith.constant 0 : index
    %1 = vector.load %arg5[%c0_1, %c0_2] : memref<128x512xf32, #tpu.memory_space<vmem>>, vector<128x512xf32>
    %c0_3 = arith.constant 0 : index
    %c0_4 = arith.constant 0 : index
    %2 = vector.load %arg6[%c0_3, %c0_4] : memref<128x256xf32, #tpu.memory_space<vmem>>, vector<128x256xf32>
    %c0_5 = arith.constant 0 : index
    %c0_6 = arith.constant 0 : index
    %3 = vector.load %arg7[%c0_5, %c0_6] : memref<128x128xf32, #tpu.memory_space<vmem>>, vector<128x128xf32>
    %c0_7 = arith.constant 0 : index
    %c0_8 = arith.constant 0 : index
    %4 = vector.load %arg1[%c0_7, %c0_8] : memref<8x256xf32, #tpu.memory_space<vmem>>, vector<8x256xf32>
    %c0_9 = arith.constant 0 : index
    %c0_10 = arith.constant 0 : index
    %5 = vector.load %arg2[%c0_9, %c0_10] : memref<8x128xf32, #tpu.memory_space<vmem>>, vector<8x128xf32>
    %c0_11 = arith.constant 0 : index
    %c0_12 = arith.constant 0 : index
    %6 = vector.load %arg3[%c0_11, %c0_12] : memref<8x128xf32, #tpu.memory_space<vmem>>, vector<8x128xf32>
    %cst = arith.constant dense<0.000000e+00> : vector<8x512xf32>
    %7 = tpu.matmul %4, %0, %cst {dimension_numbers = #tpu.dot_dimension_numbers<[1], [0], [0], [1], [0, 0, 1, 1], [], []>} : vector<8x256xf32>, vector<256x512xf32>, vector<8x512xf32> -> vector<8x512xf32>
    %cst_13 = arith.constant dense<0.000000e+00> : vector<8x512xf32>
    %8 = tpu.matmul %5, %1, %cst_13 {dimension_numbers = #tpu.dot_dimension_numbers<[1], [0], [0], [1], [0, 0, 1, 1], [], []>} : vector<8x128xf32>, vector<128x512xf32>, vector<8x512xf32> -> vector<8x512xf32>
    %9 = arith.addf %7, %8 : vector<8x512xf32>
    %c0_14 = arith.constant 0 : index
    %c0_15 = arith.constant 0 : index
    %10 = vector.load %arg8[%c0_14, %c0_15] : memref<1x512xf32, #tpu.memory_space<vmem>>, vector<1x512xf32>
    %11 = vector.broadcast %10 : vector<1x512xf32> to vector<8x512xf32>
    %12 = arith.addf %9, %11 : vector<8x512xf32>
    %cst_16 = arith.constant dense<0.000000e+00> : vector<8x256xf32>
    %13 = tpu.matmul %6, %2, %cst_16 {dimension_numbers = #tpu.dot_dimension_numbers<[1], [0], [0], [1], [0, 0, 1, 1], [], []>} : vector<8x128xf32>, vector<128x256xf32>, vector<8x256xf32> -> vector<8x256xf32>
    %14 = vector.extract_strided_slice %12 {offsets = [0, 0], sizes = [8, 128], strides = [1, 1]} : vector<8x512xf32> to vector<8x128xf32>
    %15 = vector.extract_strided_slice %13 {offsets = [0, 0], sizes = [8, 128], strides = [1, 1]} : vector<8x256xf32> to vector<8x128xf32>
    %16 = arith.addf %14, %15 : vector<8x128xf32>
    %cst_17 = arith.constant 0.000000e+00 : f32
    %17 = vector.broadcast %cst_17 : f32 to vector<8x128xf32>
    %18 = arith.subf %17, %16 : vector<8x128xf32>
    %19 = math.exp %18 : vector<8x128xf32>
    %cst_18 = arith.constant 1.000000e+00 : f32
    %20 = vector.broadcast %cst_18 : f32 to vector<8x128xf32>
    %21 = arith.addf %20, %19 : vector<8x128xf32>
    %22 = tpu.reciprocal %21 : vector<8x128xf32> -> vector<8x128xf32>
    %23 = vector.extract_strided_slice %12 {offsets = [0, 128], sizes = [8, 128], strides = [1, 1]} : vector<8x512xf32> to vector<8x128xf32>
    %24 = vector.extract_strided_slice %13 {offsets = [0, 128], sizes = [8, 128], strides = [1, 1]} : vector<8x256xf32> to vector<8x128xf32>
    %25 = arith.addf %23, %24 : vector<8x128xf32>
    %cst_19 = arith.constant 0.000000e+00 : f32
    %26 = vector.broadcast %cst_19 : f32 to vector<8x128xf32>
    %27 = arith.subf %26, %25 : vector<8x128xf32>
    %28 = math.exp %27 : vector<8x128xf32>
    %cst_20 = arith.constant 1.000000e+00 : f32
    %29 = vector.broadcast %cst_20 : f32 to vector<8x128xf32>
    %30 = arith.addf %29, %28 : vector<8x128xf32>
    %31 = tpu.reciprocal %30 : vector<8x128xf32> -> vector<8x128xf32>
    %32 = vector.extract_strided_slice %12 {offsets = [0, 256], sizes = [8, 128], strides = [1, 1]} : vector<8x512xf32> to vector<8x128xf32>
    %33 = math.tanh %32 : vector<8x128xf32>
    %34 = arith.mulf %31, %6 : vector<8x128xf32>
    %35 = arith.mulf %22, %33 : vector<8x128xf32>
    %36 = arith.addf %34, %35 : vector<8x128xf32>
    %cst_21 = arith.constant dense<0.000000e+00> : vector<8x128xf32>
    %37 = tpu.matmul %36, %3, %cst_21 {dimension_numbers = #tpu.dot_dimension_numbers<[1], [0], [0], [1], [0, 0, 1, 1], [], []>} : vector<8x128xf32>, vector<128x128xf32>, vector<8x128xf32> -> vector<8x128xf32>
    %38 = vector.extract_strided_slice %12 {offsets = [0, 384], sizes = [8, 128], strides = [1, 1]} : vector<8x512xf32> to vector<8x128xf32>
    %39 = arith.addf %38, %37 : vector<8x128xf32>
    %cst_22 = arith.constant 0.000000e+00 : f32
    %40 = vector.broadcast %cst_22 : f32 to vector<8x128xf32>
    %41 = arith.subf %40, %39 : vector<8x128xf32>
    %42 = math.exp %41 : vector<8x128xf32>
    %cst_23 = arith.constant 1.000000e+00 : f32
    %43 = vector.broadcast %cst_23 : f32 to vector<8x128xf32>
    %44 = arith.addf %43, %42 : vector<8x128xf32>
    %45 = tpu.reciprocal %44 : vector<8x128xf32> -> vector<8x128xf32>
    %46 = arith.mulf %45, %36 : vector<8x128xf32>
    %c0_24 = arith.constant 0 : index
    %c0_25 = arith.constant 0 : index
    %47 = vector.load %arg9[%c0_24, %c0_25] : memref<8x128xf32, #tpu.memory_space<vmem>>, vector<8x128xf32>
    tpu.vector_store %arg9[%c0_24, %c0_25], %46 {strides = array<i32>} : memref<8x128xf32, #tpu.memory_space<vmem>>, vector<8x128xf32>,
    %c0_26 = arith.constant 0 : index
    %c0_27 = arith.constant 0 : index
    %48 = vector.load %arg10[%c0_26, %c0_27] : memref<8x128xf32, #tpu.memory_space<vmem>>, vector<8x128xf32>
    tpu.vector_store %arg10[%c0_26, %c0_27], %36 {strides = array<i32>} : memref<8x128xf32, #tpu.memory_space<vmem>>, vector<8x128xf32>,
    return
  }
  func.func @transform_0(%arg0: i32) -> (i32, i32) {
    %c0_i32 = arith.constant 0 : i32
    %c0_i32_0 = arith.constant 0 : i32
    return %arg0, %c0_i32 : i32, i32
  }
  func.func @transform_1(%arg0: i32) -> (i32, i32) {
    %c0_i32 = arith.constant 0 : i32
    %c0_i32_0 = arith.constant 0 : i32
    return %arg0, %c0_i32 : i32, i32
  }
  func.func @transform_2(%arg0: i32) -> (i32, i32) {
    %c0_i32 = arith.constant 0 : i32
    %c0_i32_0 = arith.constant 0 : i32
    return %arg0, %c0_i32 : i32, i32
  }
  func.func @transform_3(%arg0: i32) -> (i32, i32) {
    %c0_i32 = arith.constant 0 : i32
    %c0_i32_0 = arith.constant 0 : i32
    %c0_i32_1 = arith.constant 0 : i32
    return %c0_i32, %c0_i32_0 : i32, i32
  }
  func.func @transform_4(%arg0: i32) -> (i32, i32) {
    %c0_i32 = arith.constant 0 : i32
    %c0_i32_0 = arith.constant 0 : i32
    %c0_i32_1 = arith.constant 0 : i32
    return %c0_i32, %c0_i32_0 : i32, i32
  }
  func.func @transform_5(%arg0: i32) -> (i32, i32) {
    %c0_i32 = arith.constant 0 : i32
    %c0_i32_0 = arith.constant 0 : i32
    %c0_i32_1 = arith.constant 0 : i32
    return %c0_i32, %c0_i32_0 : i32, i32
  }
  func.func @transform_6(%arg0: i32) -> (i32, i32) {
    %c0_i32 = arith.constant 0 : i32
    %c0_i32_0 = arith.constant 0 : i32
    %c0_i32_1 = arith.constant 0 : i32
    return %c0_i32, %c0_i32_0 : i32, i32
  }
  func.func @transform_7(%arg0: i32) -> (i32, i32) {
    %c0_i32 = arith.constant 0 : i32
    %c0_i32_0 = arith.constant 0 : i32
    %c0_i32_1 = arith.constant 0 : i32
    return %c0_i32, %c0_i32_0 : i32, i32
  }
  func.func @transform_8(%arg0: i32) -> (i32, i32) {
    %c0_i32 = arith.constant 0 : i32
    %c0_i32_0 = arith.constant 0 : i32
    return %arg0, %c0_i32 : i32, i32
  }
  func.func @transform_9(%arg0: i32) -> (i32, i32) {
    %c0_i32 = arith.constant 0 : i32
    %c0_i32_0 = arith.constant 0 : i32
    return %arg0, %c0_i32 : i32, i32
  }
}

</mosaic_0001>

<llo_original>
// kernel: tpu_custom_call.1
$region0: #{tpu_custom_call.1}
  #allocation0 [shape = 'u32[]', space=smem, size = 0x4, offset = 0x4, fixed_abs, tag = 'smem constant byte address 0x4 - core index']
  #allocation1 [shape = 'u32[144,128]{1,0:T(1,128)}', space=vmem, size = 0x12000, scoped, tag = 'internal scratch']
  %s0 = inlined_call_operand.hbm [shape: f32[8,256], index: 0, kind: input, shape index: {}]
  %s1 = inlined_call_operand.hbm [shape: f32[8,128], index: 1, kind: input, shape index: {}]
  %s2 = inlined_call_operand.hbm [shape: f32[8,128], index: 2, kind: input, shape index: {}]
  %s3 = inlined_call_operand.hbm [shape: f32[256,512], index: 3, kind: input, shape index: {}]
  %s4 = inlined_call_operand.hbm [shape: f32[128,512], index: 4, kind: input, shape index: {}]
  %s5 = inlined_call_operand.hbm [shape: f32[128,256], index: 5, kind: input, shape index: {}]
  %s6 = inlined_call_operand.hbm [shape: f32[128,128], index: 6, kind: input, shape index: {}]
  %s7 = inlined_call_operand.hbm [shape: f32[1,512], index: 7, kind: input, shape index: {}]
  %s8 = inlined_call_operand.hbm [shape: f32[8,128], index: 8, kind: output, shape index: {0}]
  %s9 = inlined_call_operand.hbm [shape: f32[8,128], index: 9, kind: output, shape index: {1}]
  %10 = xla_tuple %s8, %s9
  %s11 = sld [smem:[#allocation0]]
  $region82: #{tpu_custom_call.1} parent=0
    _
  %s13 = ssub.s32 1, %s11
  %s14 = scalar_select 0, %s13, %s11
  $region1: #{tpu_custom_call.1} parent=0
    #allocation2 [shape = 'u8[8192]{0}', space=vmem, size = 0x2000, scoped, tag = 'input window, operand 0, single buffered']
    #allocation3 [shape = 's32[1]{0}', space=sflag, size = 0x4, scoped, tag = 'scoped memory for tpu_custom_call.1']
    #allocation4 [shape = 's32[1]{0}', space=sflag, size = 0x4, scoped, tag = 'scoped memory for tpu_custom_call.1']
    #allocation5 [shape = 'u8[4096]{0}', space=vmem, size = 0x1000, scoped, tag = 'input window, operand 1, single buffered']
    #allocation6 [shape = 's32[1]{0}', space=sflag, size = 0x4, scoped, tag = 'scoped memory for tpu_custom_call.1']
    #allocation7 [shape = 'u8[4096]{0}', space=vmem, size = 0x1000, scoped, tag = 'input window, operand 2, single buffered']
    #allocation8 [shape = 'u8[524288]{0}', space=vmem, size = 0x80000, scoped, tag = 'input window, operand 3, single buffered']
    #allocation9 [shape = 's32[1]{0}', space=sflag, size = 0x4, scoped, tag = 'scoped memory for tpu_custom_call.1']
    #allocation10 [shape = 'u8[262144]{0}', space=vmem, size = 0x40000, scoped, tag = 'input window, operand 4, single buffered']
    #allocation11 [shape = 'u8[131072]{0}', space=vmem, size = 0x20000, scoped, tag = 'input window, operand 5, single buffered']
    #allocation12 [shape = 's32[1]{0}', space=sflag, size = 0x4, scoped, tag = 'scoped memory for tpu_custom_call.1']
    #allocation13 [shape = 'u8[65536]{0}', space=vmem, size = 0x10000, scoped, tag = 'input window, operand 6, single buffered']
    #allocation14 [shape = 'u8[2048]{0}', space=vmem, size = 0x800, scoped, tag = 'input window, operand 7, single buffered']
    #allocation15 [shape = 's32[1]{0}', space=sflag, size = 0x4, scoped, tag = 'scoped memory for tpu_custom_call.1']
    #allocation16 [shape = 'u8[4096]{0}', space=vmem, size = 0x1000, scoped, tag = 'output window, operand 0, single buffered']
    #allocation17 [shape = 'u8[4096]{0}', space=vmem, size = 0x1000, scoped, tag = 'output window, operand 1, single buffered']
    #allocation18 [shape = 's32[1]{0}', space=sflag, size = 0x4, scoped, tag = 'scoped memory for tpu_custom_call.1']
    %15 = vsyncpa [#allocation3], 0
    %16 = vsyncpa [#allocation6], 0
    %17 = vsyncpa [#allocation9], 0
    %18 = vsyncpa [#allocation12], 0
    %19 = vsyncpa [#allocation15], 0
    %20 = vsyncpa [#allocation4], 0
    %21 = vsyncpa [#allocation18], 0
    // Predicated region
    $region2: #{tpu_custom_call.1} parent=1 // pred_check
      _
    $region3: #{tpu_custom_call.1} parent=1 // pred_check_branch
      %23 = sbr.rel (0) target = $region5
    $region4: #{tpu_custom_call.1} parent=1 // pred_region
      %s25 = ssub.s32 256, 256
      %26 = vsyncadd [#allocation3], %s25
      %s28 = sshll.u32 [#allocation2], 4
      %s29 = int_to_ptr.vmem [resolvable:$true] %s28
      %31 = dma.hbm_to_vmem [thread:$0]  %s0, 256, %s29, [#allocation3]
    $region5: #{tpu_custom_call.1} parent=1 // pred_fallthru
      _
    // Predicated region
    $region6: #{tpu_custom_call.1} parent=1 // pred_check
      _
    $region7: #{tpu_custom_call.1} parent=1 // pred_check_branch
      %33 = sbr.rel (0) target = $region9
    $region8: #{tpu_custom_call.1} parent=1 // pred_region
      %s35 = ssub.s32 128, 128
      %36 = vsyncadd [#allocation6], %s35
      %s38 = sshll.u32 [#allocation5], 4
      %s39 = int_to_ptr.vmem [resolvable:$true] %s38
      %41 = dma.hbm_to_vmem [thread:$0]  %s1, 128, %s39, [#allocation6]
    $region9: #{tpu_custom_call.1} parent=1 // pred_fallthru
      _
    // Predicated region
    $region10: #{tpu_custom_call.1} parent=1 // pred_check
      _
    $region11: #{tpu_custom_call.1} parent=1 // pred_check_branch
      %43 = sbr.rel (0) target = $region13
    $region12: #{tpu_custom_call.1} parent=1 // pred_region
      %s45 = ssub.s32 128, 128
      %46 = vsyncadd [#allocation6], %s45
      %s48 = sshll.u32 [#allocation7], 4
      %s49 = int_to_ptr.vmem [resolvable:$true] %s48
      %51 = dma.hbm_to_vmem [thread:$0]  %s2, 128, %s49, [#allocation6]
    $region13: #{tpu_custom_call.1} parent=1 // pred_fallthru
      _
    // Predicated region
    $region14: #{tpu_custom_call.1} parent=1 // pred_check
      _
    $region15: #{tpu_custom_call.1} parent=1 // pred_check_branch
      %53 = sbr.rel (0) target = $region17
    $region16: #{tpu_custom_call.1} parent=1 // pred_region
      %s55 = ssub.s32 16384, 16384
      %56 = vsyncadd [#allocation9], %s55
      %s57 = sshll.u32 [#allocation8], 4
      %s58 = int_to_ptr.vmem [resolvable:$true] %s57
      %63 = dma.hbm_to_vmem [thread:$0]  %s3, 16384, %s58, [#allocation9], 512, 512, 32
    $region17: #{tpu_custom_call.1} parent=1 // pred_fallthru
      _
    // Predicated region
    $region18: #{tpu_custom_call.1} parent=1 // pred_check
      _
    $region19: #{tpu_custom_call.1} parent=1 // pred_check_branch
      %65 = sbr.rel (0) target = $region21
    $region20: #{tpu_custom_call.1} parent=1 // pred_region
      %s67 = ssub.s32 8192, 8192
      %68 = vsyncadd [#allocation9], %s67
      %s69 = sshll.u32 [#allocation10], 4
      %s70 = int_to_ptr.vmem [resolvable:$true] %s69
      %75 = dma.hbm_to_vmem [thread:$0]  %s4, 8192, %s70, [#allocation9], 512, 512, 32
    $region21: #{tpu_custom_call.1} parent=1 // pred_fallthru
      _
    // Predicated region
    $region22: #{tpu_custom_call.1} parent=1 // pred_check
      _
    $region23: #{tpu_custom_call.1} parent=1 // pred_check_branch
      %77 = sbr.rel (0) target = $region25
    $region24: #{tpu_custom_call.1} parent=1 // pred_region
      %s79 = ssub.s32 4096, 4096
      %80 = vsyncadd [#allocation12], %s79
      %s81 = sshll.u32 [#allocation11], 4
      %s82 = int_to_ptr.vmem [resolvable:$true] %s81
      %87 = dma.hbm_to_vmem [thread:$0]  %s5, 4096, %s82, [#allocation12], 256, 256, 16
    $region25: #{tpu_custom_call.1} parent=1 // pred_fallthru
      _
    // Predicated region
    $region26: #{tpu_custom_call.1} parent=1 // pred_check
      _
    $region27: #{tpu_custom_call.1} parent=1 // pred_check_branch
      %89 = sbr.rel (0) target = $region29
    $region28: #{tpu_custom_call.1} parent=1 // pred_region
      %s91 = ssub.s32 2048, 2048
      %92 = vsyncadd [#allocation12], %s91
      %s93 = sshll.u32 [#allocation13], 4
      %s94 = int_to_ptr.vmem [resolvable:$true] %s93
      %99 = dma.hbm_to_vmem [thread:$0]  %s6, 2048, %s94, [#allocation12], 128, 128, 8
    $region29: #{tpu_custom_call.1} parent=1 // pred_fallthru
      _
    // Predicated region
    $region30: #{tpu_custom_call.1} parent=1 // pred_check
      _
    $region31: #{tpu_custom_call.1} parent=1 // pred_check_branch
      %101 = sbr.rel (0) target = $region33
    $region32: #{tpu_custom_call.1} parent=1 // pred_region
      %s103 = ssub.s32 64, 64
      %104 = vsyncadd [#allocation15], %s103
      %s106 = sshll.u32 [#allocation14], 4
      %s107 = int_to_ptr.vmem [resolvable:$true] %s106
      %109 = dma.hbm_to_vmem [thread:$0]  %s7, 64, %s107, [#allocation15]
    $region33: #{tpu_custom_call.1} parent=1 // pred_fallthru
      _
    // Predicated region
    $region34: #{tpu_custom_call.1} parent=1 // pred_check
      _
    $region35: #{tpu_custom_call.1} parent=1 // pred_check_branch
      %111 = sbr.rel (0) target = $region37
    $region36: #{tpu_custom_call.1} parent=1 // pred_region
      %112 = dma.done [#allocation3], 256
    $region37: #{tpu_custom_call.1} parent=1 // pred_fallthru
      _
    // Predicated region
    $region38: #{tpu_custom_call.1} parent=1 // pred_check
      _
    $region39: #{tpu_custom_call.1} parent=1 // pred_check_branch
      %114 = sbr.rel (0) target = $region41
    $region40: #{tpu_custom_call.1} parent=1 // pred_region
      %115 = dma.done [#allocation6], 128
    $region41: #{tpu_custom_call.1} parent=1 // pred_fallthru
      _
    // Predicated region
    $region42: #{tpu_custom_call.1} parent=1 // pred_check
      _
    $region43: #{tpu_custom_call.1} parent=1 // pred_check_branch
      %117 = sbr.rel (0) target = $region45
    $region44: #{tpu_custom_call.1} parent=1 // pred_region
      %118 = dma.done [#allocation6], 128
    $region45: #{tpu_custom_call.1} parent=1 // pred_fallthru
      _
    // Predicated region
    $region46: #{tpu_custom_call.1} parent=1 // pred_check
      _
    $region47: #{tpu_custom_call.1} parent=1 // pred_check_branch
      %120 = sbr.rel (0) target = $region49
    $region48: #{tpu_custom_call.1} parent=1 // pred_region
      %121 = dma.done [#allocation9], 16384
    $region49: #{tpu_custom_call.1} parent=1 // pred_fallthru
      _
    // Predicated region
    $region50: #{tpu_custom_call.1} parent=1 // pred_check
      _
    $region51: #{tpu_custom_call.1} parent=1 // pred_check_branch
      %123 = sbr.rel (0) target = $region53
    $region52: #{tpu_custom_call.1} parent=1 // pred_region
      %124 = dma.done [#allocation9], 8192
    $region53: #{tpu_custom_call.1} parent=1 // pred_fallthru
      _
    // Predicated region
    $region54: #{tpu_custom_call.1} parent=1 // pred_check
      _
    $region55: #{tpu_custom_call.1} parent=1 // pred_check_branch
      %126 = sbr.rel (0) target = $region57
    $region56: #{tpu_custom_call.1} parent=1 // pred_region
      %127 = dma.done [#allocation12], 4096
    $region57: #{tpu_custom_call.1} parent=1 // pred_fallthru
      _
    // Predicated region
    $region58: #{tpu_custom_call.1} parent=1 // pred_check
      _
    $region59: #{tpu_custom_call.1} parent=1 // pred_check_branch
      %129 = sbr.rel (0) target = $region61
    $region60: #{tpu_custom_call.1} parent=1 // pred_region
      %130 = dma.done [#allocation12], 2048
    $region61: #{tpu_custom_call.1} parent=1 // pred_fallthru
      _
    // Predicated region
    $region62: #{tpu_custom_call.1} parent=1 // pred_check
      _
    $region63: #{tpu_custom_call.1} parent=1 // pred_check_branch
      %132 = sbr.rel (0) target = $region65
    $region64: #{tpu_custom_call.1} parent=1 // pred_region
      %133 = dma.done [#allocation15], 64
    $region65: #{tpu_custom_call.1} parent=1 // pred_fallthru
      _
    %v134 = vld [vmem:[#allocation8] sm:$0xff]
    %v135 = vld [vmem:[#allocation8 + $0x8] sm:$0xff]
    %v136 = vld [vmem:[#allocation8 + $0x10] sm:$0xff]
    %v137 = vld [vmem:[#allocation8 + $0x18] sm:$0xff]
    %v138 = vld [vmem:[#allocation8 + $0x20] sm:$0xff]
    %v139 = vld [vmem:[#allocation8 + $0x28] sm:$0xff]
    %v140 = vld [vmem:[#allocation8 + $0x30] sm:$0xff]
    %v141 = vld [vmem:[#allocation8 + $0x38] sm:$0xff]
    %v142 = vld [vmem:[#allocation8 + $0x40] sm:$0xff]
    %v143 = vld [vmem:[#allocation8 + $0x48] sm:$0xff]
    %v144 = vld [vmem:[#allocation8 + $0x50] sm:$0xff]
    %v145 = vld [vmem:[#allocation8 + $0x58] sm:$0xff]
    %v146 = vld [vmem:[#allocation8 + $0x60] sm:$0xff]
    %v147 = vld [vmem:[#allocation8 + $0x68] sm:$0xff]
    %v148 = vld [vmem:[#allocation8 + $0x70] sm:$0xff]
    %v149 = vld [vmem:[#allocation8 + $0x78] sm:$0xff]
    %v150 = vld [vmem:[#allocation8 + $0x80] sm:$0xff]
    %v151 = vld [vmem:[#allocation8 + $0x88] sm:$0xff]
    %v152 = vld [vmem:[#allocation8 + $0x90] sm:$0xff]
    %v153 = vld [vmem:[#allocation8 + $0x98] sm:$0xff]
    %v154 = vld [vmem:[#allocation8 + $0xa0] sm:$0xff]
    %v155 = vld [vmem:[#allocation8 + $0xa8] sm:$0xff]
    %v156 = vld [vmem:[#allocation8 + $0xb0] sm:$0xff]
    %v157 = vld [vmem:[#allocation8 + $0xb8] sm:$0xff]
    %v158 = vld [vmem:[#allocation8 + $0xc0] sm:$0xff]
    %v159 = vld [vmem:[#allocation8 + $0xc8] sm:$0xff]
    %v160 = vld [vmem:[#allocation8 + $0xd0] sm:$0xff]
    %v161 = vld [vmem:[#allocation8 + $0xd8] sm:$0xff]
    %v162 = vld [vmem:[#allocation8 + $0xe0] sm:$0xff]
    %v163 = vld [vmem:[#allocation8 + $0xe8] sm:$0xff]
    %v164 = vld [vmem:[#allocation8 + $0xf0] sm:$0xff]
    %v165 = vld [vmem:[#allocation8 + $0xf8] sm:$0xff]
    %v166 = vld [vmem:[#allocation8 + $0x100] sm:$0xff]
    %v167 = vld [vmem:[#allocation8 + $0x108] sm:$0xff]
    %v168 = vld [vmem:[#allocation8 + $0x110] sm:$0xff]
    %v169 = vld [vmem:[#allocation8 + $0x118] sm:$0xff]
    %v170 = vld [vmem:[#allocation8 + $0x120] sm:$0xff]
    %v171 = vld [vmem:[#allocation8 + $0x128] sm:$0xff]
    %v172 = vld [vmem:[#allocation8 + $0x130] sm:$0xff]
    %v173 = vld [vmem:[#allocation8 + $0x138] sm:$0xff]
    %v174 = vld [vmem:[#allocation8 + $0x140] sm:$0xff]
    %v175 = vld [vmem:[#allocation8 + $0x148] sm:$0xff]
    %v176 = vld [vmem:[#allocation8 + $0x150] sm:$0xff]
    %v177 = vld [vmem:[#allocation8 + $0x158] sm:$0xff]
    %v178 = vld [vmem:[#allocation8 + $0x160] sm:$0xff]
    %v179 = vld [vmem:[#allocation8 + $0x168] sm:$0xff]
    %v180 = vld [vmem:[#allocation8 + $0x170] sm:$0xff]
    %v181 = vld [vmem:[#allocation8 + $0x178] sm:$0xff]
    %v182 = vld [vmem:[#allocation8 + $0x180] sm:$0xff]
    %v183 = vld [vmem:[#allocation8 + $0x188] sm:$0xff]
    %v184 = vld [vmem:[#allocation8 + $0x190] sm:$0xff]
    %v185 = vld [vmem:[#allocation8 + $0x198] sm:$0xff]
    %v186 = vld [vmem:[#allocation8 + $0x1a0] sm:$0xff]
    %v187 = vld [vmem:[#allocation8 + $0x1a8] sm:$0xff]
    %v188 = vld [vmem:[#allocation8 + $0x1b0] sm:$0xff]
    %v189 = vld [vmem:[#allocation8 + $0x1b8] sm:$0xff]
    %v190 = vld [vmem:[#allocation8 + $0x1c0] sm:$0xff]
    %v191 = vld [vmem:[#allocation8 + $0x1c8] sm:$0xff]
    %v192 = vld [vmem:[#allocation8 + $0x1d0] sm:$0xff]
    %v193 = vld [vmem:[#allocation8 + $0x1d8] sm:$0xff]
    %v194 = vld [vmem:[#allocation8 + $0x1e0] sm:$0xff]
    %v195 = vld [vmem:[#allocation8 + $0x1e8] sm:$0xff]
    %v196 = vld [vmem:[#allocation8 + $0x1f0] sm:$0xff]
    %v197 = vld [vmem:[#allocation8 + $0x1f8] sm:$0xff]
    %v198 = vld [vmem:[#allocation8 + $0x200] sm:$0xff]
    %v199 = vld [vmem:[#allocation8 + $0x208] sm:$0xff]
    %v200 = vld [vmem:[#allocation8 + $0x210] sm:$0xff]
    %v201 = vld [vmem:[#allocation8 + $0x218] sm:$0xff]
    %v202 = vld [vmem:[#allocation8 + $0x220] sm:$0xff]
    %v203 = vld [vmem:[#allocation8 + $0x228] sm:$0xff]
    %v204 = vld [vmem:[#allocation8 + $0x230] sm:$0xff]
    %v205 = vld [vmem:[#allocation8 + $0x238] sm:$0xff]
    %v206 = vld [vmem:[#allocation8 + $0x240] sm:$0xff]
    %v207 = vld [vmem:[#allocation8 + $0x248] sm:$0xff]
    %v208 = vld [vmem:[#allocation8 + $0x250] sm:$0xff]
    %v209 = vld [vmem:[#allocation8 + $0x258] sm:$0xff]
    %v210 = vld [vmem:[#allocation8 + $0x260] sm:$0xff]
    %v211 = vld [vmem:[#allocation8 + $0x268] sm:$0xff]
    %v212 = vld [vmem:[#allocation8 + $0x270] sm:$0xff]
    %v213 = vld [vmem:[#allocation8 + $0x278] sm:$0xff]
    %v214 = vld [vmem:[#allocation8 + $0x280] sm:$0xff]
    %v215 = vld [vmem:[#allocation8 + $0x288] sm:$0xff]
    %v216 = vld [vmem:[#allocation8 + $0x290] sm:$0xff]
    %v217 = vld [vmem:[#allocation8 + $0x298] sm:$0xff]
    %v218 = vld [vmem:[#allocation8 + $0x2a0] sm:$0xff]
    %v219 = vld [vmem:[#allocation8 + $0x2a8] sm:$0xff]
    %v220 = vld [vmem:[#allocation8 + $0x2b0] sm:$0xff]
    %v221 = vld [vmem:[#allocation8 + $0x2b8] sm:$0xff]
    %v222 = vld [vmem:[#allocation8 + $0x2c0] sm:$0xff]
    %v223 = vld [vmem:[#allocation8 + $0x2c8] sm:$0xff]
    %v224 = vld [vmem:[#allocation8 + $0x2d0] sm:$0xff]
    %v225 = vld [vmem:[#allocation8 + $0x2d8] sm:$0xff]
    %v226 = vld [vmem:[#allocation8 + $0x2e0] sm:$0xff]
    %v227 = vld [vmem:[#allocation8 + $0x2e8] sm:$0xff]
    %v228 = vld [vmem:[#allocation8 + $0x2f0] sm:$0xff]
    %v229 = vld [vmem:[#allocation8 + $0x2f8] sm:$0xff]
    %v230 = vld [vmem:[#allocation8 + $0x300] sm:$0xff]
    %v231 = vld [vmem:[#allocation8 + $0x308] sm:$0xff]
    %v232 = vld [vmem:[#allocation8 + $0x310] sm:$0xff]
    %v233 = vld [vmem:[#allocation8 + $0x318] sm:$0xff]
    %v234 = vld [vmem:[#allocation8 + $0x320] sm:$0xff]
    %v235 = vld [vmem:[#allocation8 + $0x328] sm:$0xff]
    %v236 = vld [vmem:[#allocation8 + $0x330] sm:$0xff]
    %v237 = vld [vmem:[#allocation8 + $0x338] sm:$0xff]
    %v238 = vld [vmem:[#allocation8 + $0x340] sm:$0xff]
    %v239 = vld [vmem:[#allocation8 + $0x348] sm:$0xff]
    %v240 = vld [vmem:[#allocation8 + $0x350] sm:$0xff]
    %v241 = vld [vmem:[#allocation8 + $0x358] sm:$0xff]
    %v242 = vld [vmem:[#allocation8 + $0x360] sm:$0xff]
    %v243 = vld [vmem:[#allocation8 + $0x368] sm:$0xff]
    %v244 = vld [vmem:[#allocation8 + $0x370] sm:$0xff]
    %v245 = vld [vmem:[#allocation8 + $0x378] sm:$0xff]
    %v246 = vld [vmem:[#allocation8 + $0x380] sm:$0xff]
    %v247 = vld [vmem:[#allocation8 + $0x388] sm:$0xff]
    %v248 = vld [vmem:[#allocation8 + $0x390] sm:$0xff]
    %v249 = vld [vmem:[#allocation8 + $0x398] sm:$0xff]
    %v250 = vld [vmem:[#allocation8 + $0x3a0] sm:$0xff]
    %v251 = vld [vmem:[#allocation8 + $0x3a8] sm:$0xff]
    %v252 = vld [vmem:[#allocation8 + $0x3b0] sm:$0xff]
    %v253 = vld [vmem:[#allocation8 + $0x3b8] sm:$0xff]
    %v254 = vld [vmem:[#allocation8 + $0x3c0] sm:$0xff]
    %v255 = vld [vmem:[#allocation8 + $0x3c8] sm:$0xff]
    %v256 = vld [vmem:[#allocation8 + $0x3d0] sm:$0xff]
    %v257 = vld [vmem:[#allocation8 + $0x3d8] sm:$0xff]
    %v258 = vld [vmem:[#allocation8 + $0x3e0] sm:$0xff]
    %v259 = vld [vmem:[#allocation8 + $0x3e8] sm:$0xff]
    %v260 = vld [vmem:[#allocation8 + $0x3f0] sm:$0xff]
    %v261 = vld [vmem:[#allocation8 + $0x3f8] sm:$0xff]
    %v262 = vld [vmem:[#allocation10] sm:$0xff]
    %v263 = vld [vmem:[#allocation10 + $0x8] sm:$0xff]
    %v264 = vld [vmem:[#allocation10 + $0x10] sm:$0xff]
    %v265 = vld [vmem:[#allocation10 + $0x18] sm:$0xff]
    %v266 = vld [vmem:[#allocation10 + $0x20] sm:$0xff]
    %v267 = vld [vmem:[#allocation10 + $0x28] sm:$0xff]
    %v268 = vld [vmem:[#allocation10 + $0x30] sm:$0xff]
    %v269 = vld [vmem:[#allocation10 + $0x38] sm:$0xff]
    %v270 = vld [vmem:[#allocation10 + $0x40] sm:$0xff]
    %v271 = vld [vmem:[#allocation10 + $0x48] sm:$0xff]
    %v272 = vld [vmem:[#allocation10 + $0x50] sm:$0xff]
    %v273 = vld [vmem:[#allocation10 + $0x58] sm:$0xff]
    %v274 = vld [vmem:[#allocation10 + $0x60] sm:$0xff]
    %v275 = vld [vmem:[#allocation10 + $0x68] sm:$0xff]
    %v276 = vld [vmem:[#allocation10 + $0x70] sm:$0xff]
    %v277 = vld [vmem:[#allocation10 + $0x78] sm:$0xff]
    %v278 = vld [vmem:[#allocation10 + $0x80] sm:$0xff]
    %v279 = vld [vmem:[#allocation10 + $0x88] sm:$0xff]
    %v280 = vld [vmem:[#allocation10 + $0x90] sm:$0xff]
    %v281 = vld [vmem:[#allocation10 + $0x98] sm:$0xff]
    %v282 = vld [vmem:[#allocation10 + $0xa0] sm:$0xff]
    %v283 = vld [vmem:[#allocation10 + $0xa8] sm:$0xff]
    %v284 = vld [vmem:[#allocation10 + $0xb0] sm:$0xff]
    %v285 = vld [vmem:[#allocation10 + $0xb8] sm:$0xff]
    %v286 = vld [vmem:[#allocation10 + $0xc0] sm:$0xff]
    %v287 = vld [vmem:[#allocation10 + $0xc8] sm:$0xff]
    %v288 = vld [vmem:[#allocation10 + $0xd0] sm:$0xff]
    %v289 = vld [vmem:[#allocation10 + $0xd8] sm:$0xff]
    %v290 = vld [vmem:[#allocation10 + $0xe0] sm:$0xff]
    %v291 = vld [vmem:[#allocation10 + $0xe8] sm:$0xff]
    %v292 = vld [vmem:[#allocation10 + $0xf0] sm:$0xff]
    %v293 = vld [vmem:[#allocation10 + $0xf8] sm:$0xff]
    %v294 = vld [vmem:[#allocation10 + $0x100] sm:$0xff]
    %v295 = vld [vmem:[#allocation10 + $0x108] sm:$0xff]
    %v296 = vld [vmem:[#allocation10 + $0x110] sm:$0xff]
    %v297 = vld [vmem:[#allocation10 + $0x118] sm:$0xff]
    %v298 = vld [vmem:[#allocation10 + $0x120] sm:$0xff]
    %v299 = vld [vmem:[#allocation10 + $0x128] sm:$0xff]
    %v300 = vld [vmem:[#allocation10 + $0x130] sm:$0xff]
    %v301 = vld [vmem:[#allocation10 + $0x138] sm:$0xff]
    %v302 = vld [vmem:[#allocation10 + $0x140] sm:$0xff]
    %v303 = vld [vmem:[#allocation10 + $0x148] sm:$0xff]
    %v304 = vld [vmem:[#allocation10 + $0x150] sm:$0xff]
    %v305 = vld [vmem:[#allocation10 + $0x158] sm:$0xff]
    %v306 = vld [vmem:[#allocation10 + $0x160] sm:$0xff]
    %v307 = vld [vmem:[#allocation10 + $0x168] sm:$0xff]
    %v308 = vld [vmem:[#allocation10 + $0x170] sm:$0xff]
    %v309 = vld [vmem:[#allocation10 + $0x178] sm:$0xff]
    %v310 = vld [vmem:[#allocation10 + $0x180] sm:$0xff]
    %v311 = vld [vmem:[#allocation10 + $0x188] sm:$0xff]
    %v312 = vld [vmem:[#allocation10 + $0x190] sm:$0xff]
    %v313 = vld [vmem:[#allocation10 + $0x198] sm:$0xff]
    %v314 = vld [vmem:[#allocation10 + $0x1a0] sm:$0xff]
    %v315 = vld [vmem:[#allocation10 + $0x1a8] sm:$0xff]
    %v316 = vld [vmem:[#allocation10 + $0x1b0] sm:$0xff]
    %v317 = vld [vmem:[#allocation10 + $0x1b8] sm:$0xff]
    %v318 = vld [vmem:[#allocation10 + $0x1c0] sm:$0xff]
    %v319 = vld [vmem:[#allocation10 + $0x1c8] sm:$0xff]
    %v320 = vld [vmem:[#allocation10 + $0x1d0] sm:$0xff]
    %v321 = vld [vmem:[#allocation10 + $0x1d8] sm:$0xff]
    %v322 = vld [vmem:[#allocation10 + $0x1e0] sm:$0xff]
    %v323 = vld [vmem:[#allocation10 + $0x1e8] sm:$0xff]
    %v324 = vld [vmem:[#allocation10 + $0x1f0] sm:$0xff]
    %v325 = vld [vmem:[#allocation10 + $0x1f8] sm:$0xff]
    %v326 = vld [vmem:[#allocation11] sm:$0xff]
    %v327 = vld [vmem:[#allocation11 + $0x8] sm:$0xff]
    %v328 = vld [vmem:[#allocation11 + $0x10] sm:$0xff]
    %v329 = vld [vmem:[#allocation11 + $0x18] sm:$0xff]
    %v330 = vld [vmem:[#allocation11 + $0x20] sm:$0xff]
    %v331 = vld [vmem:[#allocation11 + $0x28] sm:$0xff]
    %v332 = vld [vmem:[#allocation11 + $0x30] sm:$0xff]
    %v333 = vld [vmem:[#allocation11 + $0x38] sm:$0xff]
    %v334 = vld [vmem:[#allocation11 + $0x40] sm:$0xff]
    %v335 = vld [vmem:[#allocation11 + $0x48] sm:$0xff]
    %v336 = vld [vmem:[#allocation11 + $0x50] sm:$0xff]
    %v337 = vld [vmem:[#allocation11 + $0x58] sm:$0xff]
    %v338 = vld [vmem:[#allocation11 + $0x60] sm:$0xff]
    %v339 = vld [vmem:[#allocation11 + $0x68] sm:$0xff]
    %v340 = vld [vmem:[#allocation11 + $0x70] sm:$0xff]
    %v341 = vld [vmem:[#allocation11 + $0x78] sm:$0xff]
    %v342 = vld [vmem:[#allocation11 + $0x80] sm:$0xff]
    %v343 = vld [vmem:[#allocation11 + $0x88] sm:$0xff]
    %v344 = vld [vmem:[#allocation11 + $0x90] sm:$0xff]
    %v345 = vld [vmem:[#allocation11 + $0x98] sm:$0xff]
    %v346 = vld [vmem:[#allocation11 + $0xa0] sm:$0xff]
    %v347 = vld [vmem:[#allocation11 + $0xa8] sm:$0xff]
    %v348 = vld [vmem:[#allocation11 + $0xb0] sm:$0xff]
    %v349 = vld [vmem:[#allocation11 + $0xb8] sm:$0xff]
    %v350 = vld [vmem:[#allocation11 + $0xc0] sm:$0xff]
    %v351 = vld [vmem:[#allocation11 + $0xc8] sm:$0xff]
    %v352 = vld [vmem:[#allocation11 + $0xd0] sm:$0xff]
    %v353 = vld [vmem:[#allocation11 + $0xd8] sm:$0xff]
    %v354 = vld [vmem:[#allocation11 + $0xe0] sm:$0xff]
    %v355 = vld [vmem:[#allocation11 + $0xe8] sm:$0xff]
    %v356 = vld [vmem:[#allocation11 + $0xf0] sm:$0xff]
    %v357 = vld [vmem:[#allocation11 + $0xf8] sm:$0xff]
    %v358 = vld [vmem:[#allocation13] sm:$0xff]
    %v359 = vld [vmem:[#allocation13 + $0x8] sm:$0xff]
    %v360 = vld [vmem:[#allocation13 + $0x10] sm:$0xff]
    %v361 = vld [vmem:[#allocation13 + $0x18] sm:$0xff]
    %v362 = vld [vmem:[#allocation13 + $0x20] sm:$0xff]
    %v363 = vld [vmem:[#allocation13 + $0x28] sm:$0xff]
    %v364 = vld [vmem:[#allocation13 + $0x30] sm:$0xff]
    %v365 = vld [vmem:[#allocation13 + $0x38] sm:$0xff]
    %v366 = vld [vmem:[#allocation13 + $0x40] sm:$0xff]
    %v367 = vld [vmem:[#allocation13 + $0x48] sm:$0xff]
    %v368 = vld [vmem:[#allocation13 + $0x50] sm:$0xff]
    %v369 = vld [vmem:[#allocation13 + $0x58] sm:$0xff]
    %v370 = vld [vmem:[#allocation13 + $0x60] sm:$0xff]
    %v371 = vld [vmem:[#allocation13 + $0x68] sm:$0xff]
    %v372 = vld [vmem:[#allocation13 + $0x70] sm:$0xff]
    %v373 = vld [vmem:[#allocation13 + $0x78] sm:$0xff]
    %v374 = vld [vmem:[#allocation2] sm:$0xff]
    %v375 = vld [vmem:[#allocation2 + $0x8] sm:$0xff]
    %v376 = vld [vmem:[#allocation5] sm:$0xff]
    %v377 = vld [vmem:[#allocation7] sm:$0xff]
    %378 = vmatprep.subr.mxu0 %v263
    %379 = vmatpush1.msra.mxu0 %v262
    %380 = vmatprep.subr.mxu0 %v267
    %381 = vmatpush1.msra.mxu0 %v266
    %382 = vmatprep.subr.mxu0 %v271
    %383 = vmatpush1.msra.mxu0 %v270
    %384 = vmatprep.subr.mxu0 %v275
    %385 = vmatpush1.msra.mxu0 %v274
    %386 = vmatprep.subr.mxu0 %v279
    %387 = vmatpush1.msra.mxu0 %v278
    %388 = vmatprep.subr.mxu0 %v283
    %389 = vmatpush1.msra.mxu0 %v282
    %390 = vmatprep.subr.mxu0 %v287
    %391 = vmatpush1.msra.mxu0 %v286
    %392 = vmatprep.subr.mxu0 %v291
    %393 = vmatpush1.msra.mxu0 %v290
    %394 = vmatprep.subr.mxu0 %v295
    %395 = vmatpush1.msra.mxu0 %v294
    %396 = vmatprep.subr.mxu0 %v299
    %397 = vmatpush1.msra.mxu0 %v298
    %398 = vmatprep.subr.mxu0 %v303
    %399 = vmatpush1.msra.mxu0 %v302
    %400 = vmatprep.subr.mxu0 %v307
    %401 = vmatpush1.msra.mxu0 %v306
    %402 = vmatprep.subr.mxu0 %v311
    %403 = vmatpush1.msra.mxu0 %v310
    %404 = vmatprep.subr.mxu0 %v315
    %405 = vmatpush1.msra.mxu0 %v314
    %406 = vmatprep.subr.mxu0 %v319
    %407 = vmatpush1.msra.mxu0 %v318
    %408 = vmatprep.subr.mxu0 %v323
    %409 = vmatpush1.msra.mxu0 %v322
    %410 = vmatprep.subr.mxu0 0.0
    %411 = vmatpush1.msra.mxu0 0.0
    %412 = vmatprep.subr.mxu0 0.0
    %413 = vmatpush1.msra.mxu0 0.0
    %414 = vmatprep.subr.mxu0 0.0
    %415 = vmatpush1.msra.mxu0 0.0
    %416 = vmatprep.subr.mxu0 0.0
    %417 = vmatpush1.msra.mxu0 0.0
    %418 = vmatprep.subr.mxu0 0.0
    %419 = vmatpush1.msra.mxu0 0.0
    %420 = vmatprep.subr.mxu0 0.0
    %421 = vmatpush1.msra.mxu0 0.0
    %422 = vmatprep.subr.mxu0 0.0
    %423 = vmatpush1.msra.mxu0 0.0
    %424 = vmatprep.subr.mxu0 0.0
    %425 = vmatpush1.msra.mxu0 0.0
    %426 = vmatprep.subr.mxu0 0.0
    %427 = vmatpush1.msra.mxu0 0.0
    %428 = vmatprep.subr.mxu0 0.0
    %429 = vmatpush1.msra.mxu0 0.0
    %430 = vmatprep.subr.mxu0 0.0
    %431 = vmatpush1.msra.mxu0 0.0
    %432 = vmatprep.subr.mxu0 0.0
    %433 = vmatpush1.msra.mxu0 0.0
    %434 = vmatprep.subr.mxu0 0.0
    %435 = vmatpush1.msra.mxu0 0.0
    %436 = vmatprep.subr.mxu0 0.0
    %437 = vmatpush1.msra.mxu0 0.0
    %438 = vmatprep.subr.mxu0 0.0
    %439 = vmatpush1.msra.mxu0 0.0
    %440 = vmatprep.subr.mxu0 0.0
    %441 = vmatpush1.msra.mxu0 0.0
    %442 = vmatprep.mubr.f32.mxu0 0.0
    %443 = vmatmul.mubr.f32.gmra.mrb[0].mxu0 %v376
    %v444 = vpop.f32.mrb[0].mxu0
    %v445 = vadd.f32 0.0, %v444
    %v446 = vpop.f32.mrb[0].mxu0
    %v447 = vadd.f32 0.0, %v446
    %448 = vdwg.mxu0
    %449 = vmatprep.subr.mxu0 %v265
    %450 = vmatpush1.msra.mxu0 %v264
    %451 = vmatprep.subr.mxu0 %v269
    %452 = vmatpush1.msra.mxu0 %v268
    %453 = vmatprep.subr.mxu0 %v273
    %454 = vmatpush1.msra.mxu0 %v272
    %455 = vmatprep.subr.mxu0 %v277
    %456 = vmatpush1.msra.mxu0 %v276
    %457 = vmatprep.subr.mxu0 %v281
    %458 = vmatpush1.msra.mxu0 %v280
    %459 = vmatprep.subr.mxu0 %v285
    %460 = vmatpush1.msra.mxu0 %v284
    %461 = vmatprep.subr.mxu0 %v289
    %462 = vmatpush1.msra.mxu0 %v288
    %463 = vmatprep.subr.mxu0 %v293
    %464 = vmatpush1.msra.mxu0 %v292
    %465 = vmatprep.subr.mxu0 %v297
    %466 = vmatpush1.msra.mxu0 %v296
    %467 = vmatprep.subr.mxu0 %v301
    %468 = vmatpush1.msra.mxu0 %v300
    %469 = vmatprep.subr.mxu0 %v305
    %470 = vmatpush1.msra.mxu0 %v304
    %471 = vmatprep.subr.mxu0 %v309
    %472 = vmatpush1.msra.mxu0 %v308
    %473 = vmatprep.subr.mxu0 %v313
    %474 = vmatpush1.msra.mxu0 %v312
    %475 = vmatprep.subr.mxu0 %v317
    %476 = vmatpush1.msra.mxu0 %v316
    %477 = vmatprep.subr.mxu0 %v321
    %478 = vmatpush1.msra.mxu0 %v320
    %479 = vmatprep.subr.mxu0 %v325
    %480 = vmatpush1.msra.mxu0 %v324
    %481 = vmatprep.subr.mxu0 0.0
    %482 = vmatpush1.msra.mxu0 0.0
    %483 = vmatprep.subr.mxu0 0.0
    %484 = vmatpush1.msra.mxu0 0.0
    %485 = vmatprep.subr.mxu0 0.0
    %486 = vmatpush1.msra.mxu0 0.0
    %487 = vmatprep.subr.mxu0 0.0
    %488 = vmatpush1.msra.mxu0 0.0
    %489 = vmatprep.subr.mxu0 0.0
    %490 = vmatpush1.msra.mxu0 0.0
    %491 = vmatprep.subr.mxu0 0.0
    %492 = vmatpush1.msra.mxu0 0.0
    %493 = vmatprep.subr.mxu0 0.0
    %494 = vmatpush1.msra.mxu0 0.0
    %495 = vmatprep.subr.mxu0 0.0
    %496 = vmatpush1.msra.mxu0 0.0
    %497 = vmatprep.subr.mxu0 0.0
    %498 = vmatpush1.msra.mxu0 0.0
    %499 = vmatprep.subr.mxu0 0.0
    %500 = vmatpush1.msra.mxu0 0.0
    %501 = vmatprep.subr.mxu0 0.0
    %502 = vmatpush1.msra.mxu0 0.0
    %503 = vmatprep.subr.mxu0 0.0
    %504 = vmatpush1.msra.mxu0 0.0
    %505 = vmatprep.subr.mxu0 0.0
    %506 = vmatpush1.msra.mxu0 0.0
    %507 = vmatprep.subr.mxu0 0.0
    %508 = vmatpush1.msra.mxu0 0.0
    %509 = vmatprep.subr.mxu0 0.0
    %510 = vmatpush1.msra.mxu0 0.0
    %511 = vmatprep.subr.mxu0 0.0
    %512 = vmatpush1.msra.mxu0 0.0
    %513 = vmatprep.mubr.f32.mxu0 0.0
    %514 = vmatmul.mubr.f32.gmra.mrb[0].mxu0 %v376
    %v515 = vpop.f32.mrb[0].mxu0
    %v516 = vadd.f32 0.0, %v515
    %v517 = vpop.f32.mrb[0].mxu0
    %v518 = vadd.f32 0.0, %v517
    %519 = vdwg.mxu0
    %520 = vmatprep.subr.mxu0 %v135
    %521 = vmatpush1.msra.mxu0 %v134
    %522 = vmatprep.subr.mxu0 %v139
    %523 = vmatpush1.msra.mxu0 %v138
    %524 = vmatprep.subr.mxu0 %v143
    %525 = vmatpush1.msra.mxu0 %v142
    %526 = vmatprep.subr.mxu0 %v147
    %527 = vmatpush1.msra.mxu0 %v146
    %528 = vmatprep.subr.mxu0 %v151
    %529 = vmatpush1.msra.mxu0 %v150
    %530 = vmatprep.subr.mxu0 %v155
    %531 = vmatpush1.msra.mxu0 %v154
    %532 = vmatprep.subr.mxu0 %v159
    %533 = vmatpush1.msra.mxu0 %v158
    %534 = vmatprep.subr.mxu0 %v163
    %535 = vmatpush1.msra.mxu0 %v162
    %536 = vmatprep.subr.mxu0 %v167
    %537 = vmatpush1.msra.mxu0 %v166
    %538 = vmatprep.subr.mxu0 %v171
    %539 = vmatpush1.msra.mxu0 %v170
    %540 = vmatprep.subr.mxu0 %v175
    %541 = vmatpush1.msra.mxu0 %v174
    %542 = vmatprep.subr.mxu0 %v179
    %543 = vmatpush1.msra.mxu0 %v178
    %544 = vmatprep.subr.mxu0 %v183
    %545 = vmatpush1.msra.mxu0 %v182
    %546 = vmatprep.subr.mxu0 %v187
    %547 = vmatpush1.msra.mxu0 %v186
    %548 = vmatprep.subr.mxu0 %v191
    %549 = vmatpush1.msra.mxu0 %v190
    %550 = vmatprep.subr.mxu0 %v195
    %551 = vmatpush1.msra.mxu0 %v194
    %552 = vmatprep.subr.mxu0 %v199
    %553 = vmatpush1.msra.mxu0 %v198
    %554 = vmatprep.subr.mxu0 %v203
    %555 = vmatpush1.msra.mxu0 %v202
    %556 = vmatprep.subr.mxu0 %v207
    %557 = vmatpush1.msra.mxu0 %v206
    %558 = vmatprep.subr.mxu0 %v211
    %559 = vmatpush1.msra.mxu0 %v210
    %560 = vmatprep.subr.mxu0 %v215
    %561 = vmatpush1.msra.mxu0 %v214
    %562 = vmatprep.subr.mxu0 %v219
    %563 = vmatpush1.msra.mxu0 %v218
    %564 = vmatprep.subr.mxu0 %v223
    %565 = vmatpush1.msra.mxu0 %v222
    %566 = vmatprep.subr.mxu0 %v227
    %567 = vmatpush1.msra.mxu0 %v226
    %568 = vmatprep.subr.mxu0 %v231
    %569 = vmatpush1.msra.mxu0 %v230
    %570 = vmatprep.subr.mxu0 %v235
    %571 = vmatpush1.msra.mxu0 %v234
    %572 = vmatprep.subr.mxu0 %v239
    %573 = vmatpush1.msra.mxu0 %v238
    %574 = vmatprep.subr.mxu0 %v243
    %575 = vmatpush1.msra.mxu0 %v242
    %576 = vmatprep.subr.mxu0 %v247
    %577 = vmatpush1.msra.mxu0 %v246
    %578 = vmatprep.subr.mxu0 %v251
    %579 = vmatpush1.msra.mxu0 %v250
    %580 = vmatprep.subr.mxu0 %v255
    %581 = vmatpush1.msra.mxu0 %v254
    %582 = vmatprep.subr.mxu0 %v259
    %583 = vmatpush1.msra.mxu0 %v258
    %584 = vmatprep.mubr.f32.mxu0 %v375
    %585 = vmatmul.mubr.f32.gmra.mrb[0].mxu0 %v374
    %v586 = vpop.f32.mrb[0].mxu0
    %v587 = vadd.f32 %v445, %v586
    %v588 = vpop.f32.mrb[0].mxu0
    %v589 = vadd.f32 %v447, %v588
    %590 = vdwg.mxu0
    %591 = vmatprep.subr.mxu0 %v137
    %592 = vmatpush1.msra.mxu0 %v136
    %593 = vmatprep.subr.mxu0 %v141
    %594 = vmatpush1.msra.mxu0 %v140
    %595 = vmatprep.subr.mxu0 %v145
    %596 = vmatpush1.msra.mxu0 %v144
    %597 = vmatprep.subr.mxu0 %v149
    %598 = vmatpush1.msra.mxu0 %v148
    %599 = vmatprep.subr.mxu0 %v153
    %600 = vmatpush1.msra.mxu0 %v152
    %601 = vmatprep.subr.mxu0 %v157
    %602 = vmatpush1.msra.mxu0 %v156
    %603 = vmatprep.subr.mxu0 %v161
    %604 = vmatpush1.msra.mxu0 %v160
    %605 = vmatprep.subr.mxu0 %v165
    %606 = vmatpush1.msra.mxu0 %v164
    %607 = vmatprep.subr.mxu0 %v169
    %608 = vmatpush1.msra.mxu0 %v168
    %609 = vmatprep.subr.mxu0 %v173
    %610 = vmatpush1.msra.mxu0 %v172
    %611 = vmatprep.subr.mxu0 %v177
    %612 = vmatpush1.msra.mxu0 %v176
    %613 = vmatprep.subr.mxu0 %v181
    %614 = vmatpush1.msra.mxu0 %v180
    %615 = vmatprep.subr.mxu0 %v185
    %616 = vmatpush1.msra.mxu0 %v184
    %617 = vmatprep.subr.mxu0 %v189
    %618 = vmatpush1.msra.mxu0 %v188
    %619 = vmatprep.subr.mxu0 %v193
    %620 = vmatpush1.msra.mxu0 %v192
    %621 = vmatprep.subr.mxu0 %v197
    %622 = vmatpush1.msra.mxu0 %v196
    %623 = vmatprep.subr.mxu0 %v201
    %624 = vmatpush1.msra.mxu0 %v200
    %625 = vmatprep.subr.mxu0 %v205
    %626 = vmatpush1.msra.mxu0 %v204
    %627 = vmatprep.subr.mxu0 %v209
    %628 = vmatpush1.msra.mxu0 %v208
    %629 = vmatprep.subr.mxu0 %v213
    %630 = vmatpush1.msra.mxu0 %v212
    %631 = vmatprep.subr.mxu0 %v217
    %632 = vmatpush1.msra.mxu0 %v216
    %633 = vmatprep.subr.mxu0 %v221
    %634 = vmatpush1.msra.mxu0 %v220
    %635 = vmatprep.subr.mxu0 %v225
    %636 = vmatpush1.msra.mxu0 %v224
    %637 = vmatprep.subr.mxu0 %v229
    %638 = vmatpush1.msra.mxu0 %v228
    %639 = vmatprep.subr.mxu0 %v233
    %640 = vmatpush1.msra.mxu0 %v232
    %641 = vmatprep.subr.mxu0 %v237
    %642 = vmatpush1.msra.mxu0 %v236
    %643 = vmatprep.subr.mxu0 %v241
    %644 = vmatpush1.msra.mxu0 %v240
    %645 = vmatprep.subr.mxu0 %v245
    %646 = vmatpush1.msra.mxu0 %v244
    %647 = vmatprep.subr.mxu0 %v249
    %648 = vmatpush1.msra.mxu0 %v248
    %649 = vmatprep.subr.mxu0 %v253
    %650 = vmatpush1.msra.mxu0 %v252
    %651 = vmatprep.subr.mxu0 %v257
    %652 = vmatpush1.msra.mxu0 %v256
    %653 = vmatprep.subr.mxu0 %v261
    %654 = vmatpush1.msra.mxu0 %v260
    %655 = vmatprep.mubr.f32.mxu0 %v375
    %656 = vmatmul.mubr.f32.gmra.mrb[0].mxu0 %v374
    %v657 = vpop.f32.mrb[0].mxu0
    %v658 = vadd.f32 %v516, %v657
    %v659 = vpop.f32.mrb[0].mxu0
    %v660 = vadd.f32 %v518, %v659
    %661 = vdwg.mxu0
    %v662 = vld [vmem:[#allocation14] sm:$0xf]
    %v664 = vlaneseq
    %v665 = vshrl.u32 %v664, 7
    %v666 = vsub.s32 0, %v665
    %v667 = vrot.slane %v662, %v666
    %v668 = vlaneseq
    %v669 = vshrl.u32 %v668, 7
    %v670 = vsub.s32 1, %v669
    %v671 = vrot.slane %v662, %v670
    %v672 = vlaneseq
    %v673 = vshrl.u32 %v672, 7
    %v674 = vsub.s32 2, %v673
    %v675 = vrot.slane %v662, %v674
    %v676 = vlaneseq
    %v677 = vshrl.u32 %v676, 7
    %v678 = vsub.s32 3, %v677
    %v679 = vrot.slane %v662, %v678
    %v684 = vadd.f32 %v587, %v667
    %v685 = vadd.f32 %v589, %v671
    %v686 = vadd.f32 %v658, %v675
    %v687 = vadd.f32 %v660, %v679
    %688 = vmatprep.subr.mxu0 %v327
    %689 = vmatpush1.msra.mxu0 %v326
    %690 = vmatprep.subr.mxu0 %v329
    %691 = vmatpush1.msra.mxu0 %v328
    %692 = vmatprep.subr.mxu0 %v331
    %693 = vmatpush1.msra.mxu0 %v330
    %694 = vmatprep.subr.mxu0 %v333
    %695 = vmatpush1.msra.mxu0 %v332
    %696 = vmatprep.subr.mxu0 %v335
    %697 = vmatpush1.msra.mxu0 %v334
    %698 = vmatprep.subr.mxu0 %v337
    %699 = vmatpush1.msra.mxu0 %v336
    %700 = vmatprep.subr.mxu0 %v339
    %701 = vmatpush1.msra.mxu0 %v338
    %702 = vmatprep.subr.mxu0 %v341
    %703 = vmatpush1.msra.mxu0 %v340
    %704 = vmatprep.subr.mxu0 %v343
    %705 = vmatpush1.msra.mxu0 %v342
    %706 = vmatprep.subr.mxu0 %v345
    %707 = vmatpush1.msra.mxu0 %v344
    %708 = vmatprep.subr.mxu0 %v347
    %709 = vmatpush1.msra.mxu0 %v346
    %710 = vmatprep.subr.mxu0 %v349
    %711 = vmatpush1.msra.mxu0 %v348
    %712 = vmatprep.subr.mxu0 %v351
    %713 = vmatpush1.msra.mxu0 %v350
    %714 = vmatprep.subr.mxu0 %v353
    %715 = vmatpush1.msra.mxu0 %v352
    %716 = vmatprep.subr.mxu0 %v355
    %717 = vmatpush1.msra.mxu0 %v354
    %718 = vmatprep.subr.mxu0 %v357
    %719 = vmatpush1.msra.mxu0 %v356
    %720 = vmatprep.subr.mxu0 0.0
    %721 = vmatpush1.msra.mxu0 0.0
    %722 = vmatprep.subr.mxu0 0.0
    %723 = vmatpush1.msra.mxu0 0.0
    %724 = vmatprep.subr.mxu0 0.0
    %725 = vmatpush1.msra.mxu0 0.0
    %726 = vmatprep.subr.mxu0 0.0
    %727 = vmatpush1.msra.mxu0 0.0
    %728 = vmatprep.subr.mxu0 0.0
    %729 = vmatpush1.msra.mxu0 0.0
    %730 = vmatprep.subr.mxu0 0.0
    %731 = vmatpush1.msra.mxu0 0.0
    %732 = vmatprep.subr.mxu0 0.0
    %733 = vmatpush1.msra.mxu0 0.0
    %734 = vmatprep.subr.mxu0 0.0
    %735 = vmatpush1.msra.mxu0 0.0
    %736 = vmatprep.subr.mxu0 0.0
    %737 = vmatpush1.msra.mxu0 0.0
    %738 = vmatprep.subr.mxu0 0.0
    %739 = vmatpush1.msra.mxu0 0.0
    %740 = vmatprep.subr.mxu0 0.0
    %741 = vmatpush1.msra.mxu0 0.0
    %742 = vmatprep.subr.mxu0 0.0
    %743 = vmatpush1.msra.mxu0 0.0
    %744 = vmatprep.subr.mxu0 0.0
    %745 = vmatpush1.msra.mxu0 0.0
    %746 = vmatprep.subr.mxu0 0.0
    %747 = vmatpush1.msra.mxu0 0.0
    %748 = vmatprep.subr.mxu0 0.0
    %749 = vmatpush1.msra.mxu0 0.0
    %750 = vmatprep.subr.mxu0 0.0
    %751 = vmatpush1.msra.mxu0 0.0
    %752 = vmatprep.mubr.f32.mxu0 0.0
    %753 = vmatmul.mubr.f32.gmra.mrb[0].mxu0 %v377
    %v754 = vpop.f32.mrb[0].mxu0
    %v755 = vadd.f32 0.0, %v754
    %v756 = vpop.f32.mrb[0].mxu0
    %v757 = vadd.f32 0.0, %v756
    %758 = vdwg.mxu0
    %v759 = vadd.f32 %v684, %v755
    %v760 = vsub.f32 0.0, %v759
    %v761 = vmul.f32 %v760, 1.442695
    %v762 = vpow.pop %v761
    %v763 = vadd.f32 %v762, 1.0
    %v764 = vrcp.pop %v763
    %v765 = vadd.f32 %v685, %v757
    %v766 = vsub.f32 0.0, %v765
    %v767 = vmul.f32 %v766, 1.442695
    %v768 = vpow.pop %v767
    %v769 = vadd.f32 %v768, 1.0
    %v770 = vrcp.pop %v769
    %v771 = vtanh.pop %v686
    %v772 = vmul.f32 %v770, %v377
    %v773 = vmul.f32 %v764, %v771
    %v774 = vadd.f32 %v772, %v773
    %775 = vmatprep.subr.mxu0 0.0
    %776 = vmatpush1.msra.mxu0 %v358
    %777 = vmatprep.subr.mxu0 0.0
    %778 = vmatpush1.msra.mxu0 %v359
    %779 = vmatprep.subr.mxu0 0.0
    %780 = vmatpush1.msra.mxu0 %v360
    %781 = vmatprep.subr.mxu0 0.0
    %782 = vmatpush1.msra.mxu0 %v361
    %783 = vmatprep.subr.mxu0 0.0
    %784 = vmatpush1.msra.mxu0 %v362
    %785 = vmatprep.subr.mxu0 0.0
    %786 = vmatpush1.msra.mxu0 %v363
    %787 = vmatprep.subr.mxu0 0.0
    %788 = vmatpush1.msra.mxu0 %v364
    %789 = vmatprep.subr.mxu0 0.0
    %790 = vmatpush1.msra.mxu0 %v365
    %791 = vmatprep.subr.mxu0 0.0
    %792 = vmatpush1.msra.mxu0 %v366
    %793 = vmatprep.subr.mxu0 0.0
    %794 = vmatpush1.msra.mxu0 %v367
    %795 = vmatprep.subr.mxu0 0.0
    %796 = vmatpush1.msra.mxu0 %v368
    %797 = vmatprep.subr.mxu0 0.0
    %798 = vmatpush1.msra.mxu0 %v369
    %799 = vmatprep.subr.mxu0 0.0
    %800 = vmatpush1.msra.mxu0 %v370
    %801 = vmatprep.subr.mxu0 0.0
    %802 = vmatpush1.msra.mxu0 %v371
    %803 = vmatprep.subr.mxu0 0.0
    %804 = vmatpush1.msra.mxu0 %v372
    %805 = vmatprep.subr.mxu0 0.0
    %806 = vmatpush1.msra.mxu0 %v373
    %807 = vmatprep.subr.mxu0 0.0
    %808 = vmatpush1.msra.mxu0 0.0
    %809 = vmatprep.subr.mxu0 0.0
    %810 = vmatpush1.msra.mxu0 0.0
    %811 = vmatprep.subr.mxu0 0.0
    %812 = vmatpush1.msra.mxu0 0.0
    %813 = vmatprep.subr.mxu0 0.0
    %814 = vmatpush1.msra.mxu0 0.0
    %815 = vmatprep.subr.mxu0 0.0
    %816 = vmatpush1.msra.mxu0 0.0
    %817 = vmatprep.subr.mxu0 0.0
    %818 = vmatpush1.msra.mxu0 0.0
    %819 = vmatprep.subr.mxu0 0.0
    %820 = vmatpush1.msra.mxu0 0.0
    %821 = vmatprep.subr.mxu0 0.0
    %822 = vmatpush1.msra.mxu0 0.0
    %823 = vmatprep.subr.mxu0 0.0
    %824 = vmatpush1.msra.mxu0 0.0
    %825 = vmatprep.subr.mxu0 0.0
    %826 = vmatpush1.msra.mxu0 0.0
    %827 = vmatprep.subr.mxu0 0.0
    %828 = vmatpush1.msra.mxu0 0.0
    %829 = vmatprep.subr.mxu0 0.0
    %830 = vmatpush1.msra.mxu0 0.0
    %831 = vmatprep.subr.mxu0 0.0
    %832 = vmatpush1.msra.mxu0 0.0
    %833 = vmatprep.subr.mxu0 0.0
    %834 = vmatpush1.msra.mxu0 0.0
    %835 = vmatprep.subr.mxu0 0.0
    %836 = vmatpush1.msra.mxu0 0.0
    %837 = vmatprep.subr.mxu0 0.0
    %838 = vmatpush1.msra.mxu0 0.0
    %839 = vmatprep.mubr.f32.mxu0 0.0
    %840 = vmatmul.mubr.f32.gmra.mrb[0].mxu0 %v774
    %v841 = vpop.f32.mrb[0].mxu0
    %v842 = vadd.f32 0.0, %v841
    %v843 = vpop.f32.mrb[0].mxu0
    %844 = vdwg.mxu0
    %v845 = vadd.f32 %v687, %v842
    %v846 = vsub.f32 0.0, %v845
    %v847 = vmul.f32 %v846, 1.442695
    %v848 = vpow.pop %v847
    %v849 = vadd.f32 %v848, 1.0
    %v850 = vrcp.pop %v849
    %v851 = vmul.f32 %v850, %v774
    %852 = vst [vmem:[#allocation16] sm:$0xff] %v851
    %853 = vst [vmem:[#allocation17] sm:$0xff] %v774
    // Predicated region
    $region66: #{tpu_custom_call.1} parent=1 // pred_check
      _
    $region67: #{tpu_custom_call.1} parent=1 // pred_check_branch
      %855 = sbr.rel (0) target = $region69
    $region68: #{tpu_custom_call.1} parent=1 // pred_region
      %s857 = ssub.s32 128, 128
      %858 = vsyncadd [#allocation4], %s857
      %s860 = sshll.u32 [#allocation16], 4
      %s861 = int_to_ptr.vmem [resolvable:$true] %s860
      %863 = dma.vmem_to_hbm [thread:$0]  %s861, 128, %s8, [#allocation4]
    $region69: #{tpu_custom_call.1} parent=1 // pred_fallthru
      _
    // Predicated region
    $region70: #{tpu_custom_call.1} parent=1 // pred_check
      _
    $region71: #{tpu_custom_call.1} parent=1 // pred_check_branch
      %865 = sbr.rel (0) target = $region73
    $region72: #{tpu_custom_call.1} parent=1 // pred_region
      %s867 = ssub.s32 128, 128
      %868 = vsyncadd [#allocation18], %s867
      %s870 = sshll.u32 [#allocation17], 4
      %s871 = int_to_ptr.vmem [resolvable:$true] %s870
      %873 = dma.vmem_to_hbm [thread:$0]  %s871, 128, %s9, [#allocation18]
    $region73: #{tpu_custom_call.1} parent=1 // pred_fallthru
      _
    // Predicated region
    $region74: #{tpu_custom_call.1} parent=1 // pred_check
      _
    $region75: #{tpu_custom_call.1} parent=1 // pred_check_branch
      %875 = sbr.rel (0) target = $region77
    $region76: #{tpu_custom_call.1} parent=1 // pred_region
      %876 = dma.done [#allocation4], 128
    $region77: #{tpu_custom_call.1} parent=1 // pred_fallthru
      _
    // Predicated region
    $region78: #{tpu_custom_call.1} parent=1 // pred_check
      _
    $region79: #{tpu_custom_call.1} parent=1 // pred_check_branch
      %878 = sbr.rel (0) target = $region81
    $region80: #{tpu_custom_call.1} parent=1 // pred_region
      %879 = dma.done [#allocation18], 128
    $region81: #{tpu_custom_call.1} parent=1 // pred_fallthru
      _
    %880 = vsyncpa [#allocation3], 1
    %881 = vsyncpa [#allocation6], 1
    %882 = vsyncpa [#allocation9], 1
    %883 = vsyncpa [#allocation12], 1
    %884 = vsyncpa [#allocation15], 1
    %885 = vsyncpa [#allocation4], 1
    %886 = vsyncpa [#allocation18], 1

// kernel: tpu_custom_call.1
$region0: #{tpu_custom_call.1}
  #allocation0 [shape = 'u32[]', space=smem, size = 0x4, offset = 0x4, fixed_abs, tag = 'smem constant byte address 0x4 - core index']
  #allocation1 [shape = 'u32[144,128]{1,0:T(1,128)}', space=vmem, size = 0x12000, scoped, tag = 'internal scratch']
  %s0 = inlined_call_operand.hbm [shape: f32[8,256], index: 0, kind: input, shape index: {}]
  %s1 = inlined_call_operand.hbm [shape: f32[8,128], index: 1, kind: input, shape index: {}]
  %s2 = inlined_call_operand.hbm [shape: f32[8,128], index: 2, kind: input, shape index: {}]
  %s3 = inlined_call_operand.hbm [shape: f32[256,512], index: 3, kind: input, shape index: {}]
  %s4 = inlined_call_operand.hbm [shape: f32[128,512], index: 4, kind: input, shape index: {}]
  %s5 = inlined_call_operand.hbm [shape: f32[128,256], index: 5, kind: input, shape index: {}]
  %s6 = inlined_call_operand.hbm [shape: f32[128,128], index: 6, kind: input, shape index: {}]
  %s7 = inlined_call_operand.hbm [shape: f32[1,512], index: 7, kind: input, shape index: {}]
  %s8 = inlined_call_operand.hbm [shape: f32[8,128], index: 8, kind: output, shape index: {0}]
  %s9 = inlined_call_operand.hbm [shape: f32[8,128], index: 9, kind: output, shape index: {1}]
  %10 = xla_tuple %s8, %s9
  %s11 = sld [smem:[#allocation0]]
  $region82: #{tpu_custom_call.1} parent=0
    _
  %s13 = ssub.s32 1, %s11
  %s14 = scalar_select 0, %s13, %s11
  $region1: #{tpu_custom_call.1} parent=0
    #allocation2 [shape = 'u8[8192]{0}', space=vmem, size = 0x2000, scoped, tag = 'input window, operand 0, single buffered']
    #allocation3 [shape = 's32[1]{0}', space=sflag, size = 0x4, scoped, tag = 'scoped memory for tpu_custom_call.1']
    #allocation4 [shape = 's32[1]{0}', space=sflag, size = 0x4, scoped, tag = 'scoped memory for tpu_custom_call.1']
    #allocation5 [shape = 'u8[4096]{0}', space=vmem, size = 0x1000, scoped, tag = 'input window, operand 1, single buffered']
    #allocation6 [shape = 's32[1]{0}', space=sflag, size = 0x4, scoped, tag = 'scoped memory for tpu_custom_call.1']
    #allocation7 [shape = 'u8[4096]{0}', space=vmem, size = 0x1000, scoped, tag = 'input window, operand 2, single buffered']
    #allocation8 [shape = 'u8[524288]{0}', space=vmem, size = 0x80000, scoped, tag = 'input window, operand 3, single buffered']
    #allocation9 [shape = 's32[1]{0}', space=sflag, size = 0x4, scoped, tag = 'scoped memory for tpu_custom_call.1']
    #allocation10 [shape = 'u8[262144]{0}', space=vmem, size = 0x40000, scoped, tag = 'input window, operand 4, single buffered']
    #allocation11 [shape = 'u8[131072]{0}', space=vmem, size = 0x20000, scoped, tag = 'input window, operand 5, single buffered']
    #allocation12 [shape = 's32[1]{0}', space=sflag, size = 0x4, scoped, tag = 'scoped memory for tpu_custom_call.1']
    #allocation13 [shape = 'u8[65536]{0}', space=vmem, size = 0x10000, scoped, tag = 'input window, operand 6, single buffered']
    #allocation14 [shape = 'u8[2048]{0}', space=vmem, size = 0x800, scoped, tag = 'input window, operand 7, single buffered']
    #allocation15 [shape = 's32[1]{0}', space=sflag, size = 0x4, scoped, tag = 'scoped memory for tpu_custom_call.1']
    #allocation16 [shape = 'u8[4096]{0}', space=vmem, size = 0x1000, scoped, tag = 'output window, operand 0, single buffered']
    #allocation17 [shape = 'u8[4096]{0}', space=vmem, size = 0x1000, scoped, tag = 'output window, operand 1, single buffered']
    #allocation18 [shape = 's32[1]{0}', space=sflag, size = 0x4, scoped, tag = 'scoped memory for tpu_custom_call.1']
    %15 = vsyncpa [#allocation3], 0
    %16 = vsyncpa [#allocation6], 0
    %17 = vsyncpa [#allocation9], 0
    %18 = vsyncpa [#allocation12], 0
    %19 = vsyncpa [#allocation15], 0
    %20 = vsyncpa [#allocation4], 0
    %21 = vsyncpa [#allocation18], 0
    // Predicated region
    $region2: #{tpu_custom_call.1} parent=1 // pred_check
      _
    $region3: #{tpu_custom_call.1} parent=1 // pred_check_branch
      %23 = sbr.rel (0) target = $region5
    $region4: #{tpu_custom_call.1} parent=1 // pred_region
      %s25 = ssub.s32 256, 256
      %26 = vsyncadd [#allocation3], %s25
      %s28 = sshll.u32 [#allocation2], 4
      %s29 = int_to_ptr.vmem [resolvable:$true] %s28
      %31 = dma.hbm_to_vmem [thread:$0]  %s0, 256, %s29, [#allocation3]
    $region5: #{tpu_custom_call.1} parent=1 // pred_fallthru
      _
    // Predicated region
    $region6: #{tpu_custom_call.1} parent=1 // pred_check
      _
    $region7: #{tpu_custom_call.1} parent=1 // pred_check_branch
      %33 = sbr.rel (0) target = $region9
    $region8: #{tpu_custom_call.1} parent=1 // pred_region
      %s35 = ssub.s32 128, 128
      %36 = vsyncadd [#allocation6], %s35
      %s38 = sshll.u32 [#allocation5], 4
      %s39 = int_to_ptr.vmem [resolvable:$true] %s38
      %41 = dma.hbm_to_vmem [thread:$0]  %s1, 128, %s39, [#allocation6]
    $region9: #{tpu_custom_call.1} parent=1 // pred_fallthru
      _
    // Predicated region
    $region10: #{tpu_custom_call.1} parent=1 // pred_check
      _
    $region11: #{tpu_custom_call.1} parent=1 // pred_check_branch
      %43 = sbr.rel (0) target = $region13
    $region12: #{tpu_custom_call.1} parent=1 // pred_region
      %s45 = ssub.s32 128, 128
      %46 = vsyncadd [#allocation6], %s45
      %s48 = sshll.u32 [#allocation7], 4
      %s49 = int_to_ptr.vmem [resolvable:$true] %s48
      %51 = dma.hbm_to_vmem [thread:$0]  %s2, 128, %s49, [#allocation6]
    $region13: #{tpu_custom_call.1} parent=1 // pred_fallthru
      _
    // Predicated region
    $region14: #{tpu_custom_call.1} parent=1 // pred_check
      _
    $region15: #{tpu_custom_call.1} parent=1 // pred_check_branch
      %53 = sbr.rel (0) target = $region17
    $region16: #{tpu_custom_call.1} parent=1 // pred_region
      %s55 = ssub.s32 16384, 16384
      %56 = vsyncadd [#allocation9], %s55
      %s57 = sshll.u32 [#allocation8], 4
      %s58 = int_to_ptr.vmem [resolvable:$true] %s57
      %63 = dma.hbm_to_vmem [thread:$0]  %s3, 16384, %s58, [#allocation9], 512, 512, 32
    $region17: #{tpu_custom_call.1} parent=1 // pred_fallthru
      _
    // Predicated region
    $region18: #{tpu_custom_call.1} parent=1 // pred_check
      _
    $region19: #{tpu_custom_call.1} parent=1 // pred_check_branch
      %65 = sbr.rel (0) target = $region21
    $region20: #{tpu_custom_call.1} parent=1 // pred_region
      %s67 = ssub.s32 8192, 8192
      %68 = vsyncadd [#allocation9], %s67
      %s69 = sshll.u32 [#allocation10], 4
      %s70 = int_to_ptr.vmem [resolvable:$true] %s69
      %75 = dma.hbm_to_vmem [thread:$0]  %s4, 8192, %s70, [#allocation9], 512, 512, 32
    $region21: #{tpu_custom_call.1} parent=1 // pred_fallthru
      _
    // Predicated region
    $region22: #{tpu_custom_call.1} parent=1 // pred_check
      _
    $region23: #{tpu_custom_call.1} parent=1 // pred_check_branch
      %77 = sbr.rel (0) target = $region25
    $region24: #{tpu_custom_call.1} parent=1 // pred_region
      %s79 = ssub.s32 4096, 4096
      %80 = vsyncadd [#allocation12], %s79
      %s81 = sshll.u32 [#allocation11], 4
      %s82 = int_to_ptr.vmem [resolvable:$true] %s81
      %87 = dma.hbm_to_vmem [thread:$0]  %s5, 4096, %s82, [#allocation12], 256, 256, 16
    $region25: #{tpu_custom_call.1} parent=1 // pred_fallthru
      _
    // Predicated region
    $region26: #{tpu_custom_call.1} parent=1 // pred_check
      _
    $region27: #{tpu_custom_call.1} parent=1 // pred_check_branch
      %89 = sbr.rel (0) target = $region29
    $region28: #{tpu_custom_call.1} parent=1 // pred_region
      %s91 = ssub.s32 2048, 2048
      %92 = vsyncadd [#allocation12], %s91
      %s93 = sshll.u32 [#allocation13], 4
      %s94 = int_to_ptr.vmem [resolvable:$true] %s93
      %99 = dma.hbm_to_vmem [thread:$0]  %s6, 2048, %s94, [#allocation12], 128, 128, 8
    $region29: #{tpu_custom_call.1} parent=1 // pred_fallthru
      _
    // Predicated region
    $region30: #{tpu_custom_call.1} parent=1 // pred_check
      _
    $region31: #{tpu_custom_call.1} parent=1 // pred_check_branch
      %101 = sbr.rel (0) target = $region33
    $region32: #{tpu_custom_call.1} parent=1 // pred_region
      %s103 = ssub.s32 64, 64
      %104 = vsyncadd [#allocation15], %s103
      %s106 = sshll.u32 [#allocation14], 4
      %s107 = int_to_ptr.vmem [resolvable:$true] %s106
      %109 = dma.hbm_to_vmem [thread:$0]  %s7, 64, %s107, [#allocation15]
    $region33: #{tpu_custom_call.1} parent=1 // pred_fallthru
      _
    // Predicated region
    $region34: #{tpu_custom_call.1} parent=1 // pred_check
      _
    $region35: #{tpu_custom_call.1} parent=1 // pred_check_branch
      %111 = sbr.rel (0) target = $region37
    $region36: #{tpu_custom_call.1} parent=1 // pred_region
      %112 = dma.done [#allocation3], 256
    $region37: #{tpu_custom_call.1} parent=1 // pred_fallthru
      _
    // Predicated region
    $region38: #{tpu_custom_call.1} parent=1 // pred_check
      _
    $region39: #{tpu_custom_call.1} parent=1 // pred_check_branch
      %114 = sbr.rel (0) target = $region41
    $region40: #{tpu_custom_call.1} parent=1 // pred_region
      %115 = dma.done [#allocation6], 128
    $region41: #{tpu_custom_call.1} parent=1 // pred_fallthru
      _
    // Predicated region
    $region42: #{tpu_custom_call.1} parent=1 // pred_check
      _
    $region43: #{tpu_custom_call.1} parent=1 // pred_check_branch
      %117 = sbr.rel (0) target = $region45
    $region44: #{tpu_custom_call.1} parent=1 // pred_region
      %118 = dma.done [#allocation6], 128
    $region45: #{tpu_custom_call.1} parent=1 // pred_fallthru
      _
    // Predicated region
    $region46: #{tpu_custom_call.1} parent=1 // pred_check
      _
    $region47: #{tpu_custom_call.1} parent=1 // pred_check_branch
      %120 = sbr.rel (0) target = $region49
    $region48: #{tpu_custom_call.1} parent=1 // pred_region
      %121 = dma.done [#allocation9], 16384
    $region49: #{tpu_custom_call.1} parent=1 // pred_fallthru
      _
    // Predicated region
    $region50: #{tpu_custom_call.1} parent=1 // pred_check
      _
    $region51: #{tpu_custom_call.1} parent=1 // pred_check_branch
      %123 = sbr.rel (0) target = $region53
    $region52: #{tpu_custom_call.1} parent=1 // pred_region
      %124 = dma.done [#allocation9], 8192
    $region53: #{tpu_custom_call.1} parent=1 // pred_fallthru
      _
    // Predicated region
    $region54: #{tpu_custom_call.1} parent=1 // pred_check
      _
    $region55: #{tpu_custom_call.1} parent=1 // pred_check_branch
      %126 = sbr.rel (0) target = $region57
    $region56: #{tpu_custom_call.1} parent=1 // pred_region
      %127 = dma.done [#allocation12], 4096
    $region57: #{tpu_custom_call.1} parent=1 // pred_fallthru
      _
    // Predicated region
    $region58: #{tpu_custom_call.1} parent=1 // pred_check
      _
    $region59: #{tpu_custom_call.1} parent=1 // pred_check_branch
      %129 = sbr.rel (0) target = $region61
    $region60: #{tpu_custom_call.1} parent=1 // pred_region
      %130 = dma.done [#allocation12], 2048
    $region61: #{tpu_custom_call.1} parent=1 // pred_fallthru
      _
    // Predicated region
    $region62: #{tpu_custom_call.1} parent=1 // pred_check
      _
    $region63: #{tpu_custom_call.1} parent=1 // pred_check_branch
      %132 = sbr.rel (0) target = $region65
    $region64: #{tpu_custom_call.1} parent=1 // pred_region
      %133 = dma.done [#allocation15], 64
    $region65: #{tpu_custom_call.1} parent=1 // pred_fallthru
      _
    %v134 = vld [vmem:[#allocation8] sm:$0xff]
    %v135 = vld [vmem:[#allocation8 + $0x8] sm:$0xff]
    %v136 = vld [vmem:[#allocation8 + $0x10] sm:$0xff]
    %v137 = vld [vmem:[#allocation8 + $0x18] sm:$0xff]
    %v138 = vld [vmem:[#allocation8 + $0x20] sm:$0xff]
    %v139 = vld [vmem:[#allocation8 + $0x28] sm:$0xff]
    %v140 = vld [vmem:[#allocation8 + $0x30] sm:$0xff]
    %v141 = vld [vmem:[#allocation8 + $0x38] sm:$0xff]
    %v142 = vld [vmem:[#allocation8 + $0x40] sm:$0xff]
    %v143 = vld [vmem:[#allocation8 + $0x48] sm:$0xff]
    %v144 = vld [vmem:[#allocation8 + $0x50] sm:$0xff]
    %v145 = vld [vmem:[#allocation8 + $0x58] sm:$0xff]
    %v146 = vld [vmem:[#allocation8 + $0x60] sm:$0xff]
    %v147 = vld [vmem:[#allocation8 + $0x68] sm:$0xff]
    %v148 = vld [vmem:[#allocation8 + $0x70] sm:$0xff]
    %v149 = vld [vmem:[#allocation8 + $0x78] sm:$0xff]
    %v150 = vld [vmem:[#allocation8 + $0x80] sm:$0xff]
    %v151 = vld [vmem:[#allocation8 + $0x88] sm:$0xff]
    %v152 = vld [vmem:[#allocation8 + $0x90] sm:$0xff]
    %v153 = vld [vmem:[#allocation8 + $0x98] sm:$0xff]
    %v154 = vld [vmem:[#allocation8 + $0xa0] sm:$0xff]
    %v155 = vld [vmem:[#allocation8 + $0xa8] sm:$0xff]
    %v156 = vld [vmem:[#allocation8 + $0xb0] sm:$0xff]
    %v157 = vld [vmem:[#allocation8 + $0xb8] sm:$0xff]
    %v158 = vld [vmem:[#allocation8 + $0xc0] sm:$0xff]
    %v159 = vld [vmem:[#allocation8 + $0xc8] sm:$0xff]
    %v160 = vld [vmem:[#allocation8 + $0xd0] sm:$0xff]
    %v161 = vld [vmem:[#allocation8 + $0xd8] sm:$0xff]
    %v162 = vld [vmem:[#allocation8 + $0xe0] sm:$0xff]
    %v163 = vld [vmem:[#allocation8 + $0xe8] sm:$0xff]
    %v164 = vld [vmem:[#allocation8 + $0xf0] sm:$0xff]
    %v165 = vld [vmem:[#allocation8 + $0xf8] sm:$0xff]
    %v166 = vld [vmem:[#allocation8 + $0x100] sm:$0xff]
    %v167 = vld [vmem:[#allocation8 + $0x108] sm:$0xff]
    %v168 = vld [vmem:[#allocation8 + $0x110] sm:$0xff]
    %v169 = vld [vmem:[#allocation8 + $0x118] sm:$0xff]
    %v170 = vld [vmem:[#allocation8 + $0x120] sm:$0xff]
    %v171 = vld [vmem:[#allocation8 + $0x128] sm:$0xff]
    %v172 = vld [vmem:[#allocation8 + $0x130] sm:$0xff]
    %v173 = vld [vmem:[#allocation8 + $0x138] sm:$0xff]
    %v174 = vld [vmem:[#allocation8 + $0x140] sm:$0xff]
    %v175 = vld [vmem:[#allocation8 + $0x148] sm:$0xff]
    %v176 = vld [vmem:[#allocation8 + $0x150] sm:$0xff]
    %v177 = vld [vmem:[#allocation8 + $0x158] sm:$0xff]
    %v178 = vld [vmem:[#allocation8 + $0x160] sm:$0xff]
    %v179 = vld [vmem:[#allocation8 + $0x168] sm:$0xff]
    %v180 = vld [vmem:[#allocation8 + $0x170] sm:$0xff]
    %v181 = vld [vmem:[#allocation8 + $0x178] sm:$0xff]
    %v182 = vld [vmem:[#allocation8 + $0x180] sm:$0xff]
    %v183 = vld [vmem:[#allocation8 + $0x188] sm:$0xff]
    %v184 = vld [vmem:[#allocation8 + $0x190] sm:$0xff]
    %v185 = vld [vmem:[#allocation8 + $0x198] sm:$0xff]
    %v186 = vld [vmem:[#allocation8 + $0x1a0] sm:$0xff]
    %v187 = vld [vmem:[#allocation8 + $0x1a8] sm:$0xff]
    %v188 = vld [vmem:[#allocation8 + $0x1b0] sm:$0xff]
    %v189 = vld [vmem:[#allocation8 + $0x1b8] sm:$0xff]
    %v190 = vld [vmem:[#allocation8 + $0x1c0] sm:$0xff]
    %v191 = vld [vmem:[#allocation8 + $0x1c8] sm:$0xff]
    %v192 = vld [vmem:[#allocation8 + $0x1d0] sm:$0xff]
    %v193 = vld [vmem:[#allocation8 + $0x1d8] sm:$0xff]
    %v194 = vld [vmem:[#allocation8 + $0x1e0] sm:$0xff]
    %v195 = vld [vmem:[#allocation8 + $0x1e8] sm:$0xff]
    %v196 = vld [vmem:[#allocation8 + $0x1f0] sm:$0xff]
    %v197 = vld [vmem:[#allocation8 + $0x1f8] sm:$0xff]
    %v198 = vld [vmem:[#allocation8 + $0x200] sm:$0xff]
    %v199 = vld [vmem:[#allocation8 + $0x208] sm:$0xff]
    %v200 = vld [vmem:[#allocation8 + $0x210] sm:$0xff]
    %v201 = vld [vmem:[#allocation8 + $0x218] sm:$0xff]
    %v202 = vld [vmem:[#allocation8 + $0x220] sm:$0xff]
    %v203 = vld [vmem:[#allocation8 + $0x228] sm:$0xff]
    %v204 = vld [vmem:[#allocation8 + $0x230] sm:$0xff]
    %v205 = vld [vmem:[#allocation8 + $0x238] sm:$0xff]
    %v206 = vld [vmem:[#allocation8 + $0x240] sm:$0xff]
    %v207 = vld [vmem:[#allocation8 + $0x248] sm:$0xff]
    %v208 = vld [vmem:[#allocation8 + $0x250] sm:$0xff]
    %v209 = vld [vmem:[#allocation8 + $0x258] sm:$0xff]
    %v210 = vld [vmem:[#allocation8 + $0x260] sm:$0xff]
    %v211 = vld [vmem:[#allocation8 + $0x268] sm:$0xff]
    %v212 = vld [vmem:[#allocation8 + $0x270] sm:$0xff]
    %v213 = vld [vmem:[#allocation8 + $0x278] sm:$0xff]
    %v214 = vld [vmem:[#allocation8 + $0x280] sm:$0xff]
    %v215 = vld [vmem:[#allocation8 + $0x288] sm:$0xff]
    %v216 = vld [vmem:[#allocation8 + $0x290] sm:$0xff]
    %v217 = vld [vmem:[#allocation8 + $0x298] sm:$0xff]
    %v218 = vld [vmem:[#allocation8 + $0x2a0] sm:$0xff]
    %v219 = vld [vmem:[#allocation8 + $0x2a8] sm:$0xff]
    %v220 = vld [vmem:[#allocation8 + $0x2b0] sm:$0xff]
    %v221 = vld [vmem:[#allocation8 + $0x2b8] sm:$0xff]
    %v222 = vld [vmem:[#allocation8 + $0x2c0] sm:$0xff]
    %v223 = vld [vmem:[#allocation8 + $0x2c8] sm:$0xff]
    %v224 = vld [vmem:[#allocation8 + $0x2d0] sm:$0xff]
    %v225 = vld [vmem:[#allocation8 + $0x2d8] sm:$0xff]
    %v226 = vld [vmem:[#allocation8 + $0x2e0] sm:$0xff]
    %v227 = vld [vmem:[#allocation8 + $0x2e8] sm:$0xff]
    %v228 = vld [vmem:[#allocation8 + $0x2f0] sm:$0xff]
    %v229 = vld [vmem:[#allocation8 + $0x2f8] sm:$0xff]
    %v230 = vld [vmem:[#allocation8 + $0x300] sm:$0xff]
    %v231 = vld [vmem:[#allocation8 + $0x308] sm:$0xff]
    %v232 = vld [vmem:[#allocation8 + $0x310] sm:$0xff]
    %v233 = vld [vmem:[#allocation8 + $0x318] sm:$0xff]
    %v234 = vld [vmem:[#allocation8 + $0x320] sm:$0xff]
    %v235 = vld [vmem:[#allocation8 + $0x328] sm:$0xff]
    %v236 = vld [vmem:[#allocation8 + $0x330] sm:$0xff]
    %v237 = vld [vmem:[#allocation8 + $0x338] sm:$0xff]
    %v238 = vld [vmem:[#allocation8 + $0x340] sm:$0xff]
    %v239 = vld [vmem:[#allocation8 + $0x348] sm:$0xff]
    %v240 = vld [vmem:[#allocation8 + $0x350] sm:$0xff]
    %v241 = vld [vmem:[#allocation8 + $0x358] sm:$0xff]
    %v242 = vld [vmem:[#allocation8 + $0x360] sm:$0xff]
    %v243 = vld [vmem:[#allocation8 + $0x368] sm:$0xff]
    %v244 = vld [vmem:[#allocation8 + $0x370] sm:$0xff]
    %v245 = vld [vmem:[#allocation8 + $0x378] sm:$0xff]
    %v246 = vld [vmem:[#allocation8 + $0x380] sm:$0xff]
    %v247 = vld [vmem:[#allocation8 + $0x388] sm:$0xff]
    %v248 = vld [vmem:[#allocation8 + $0x390] sm:$0xff]
    %v249 = vld [vmem:[#allocation8 + $0x398] sm:$0xff]
    %v250 = vld [vmem:[#allocation8 + $0x3a0] sm:$0xff]
    %v251 = vld [vmem:[#allocation8 + $0x3a8] sm:$0xff]
    %v252 = vld [vmem:[#allocation8 + $0x3b0] sm:$0xff]
    %v253 = vld [vmem:[#allocation8 + $0x3b8] sm:$0xff]
    %v254 = vld [vmem:[#allocation8 + $0x3c0] sm:$0xff]
    %v255 = vld [vmem:[#allocation8 + $0x3c8] sm:$0xff]
    %v256 = vld [vmem:[#allocation8 + $0x3d0] sm:$0xff]
    %v257 = vld [vmem:[#allocation8 + $0x3d8] sm:$0xff]
    %v258 = vld [vmem:[#allocation8 + $0x3e0] sm:$0xff]
    %v259 = vld [vmem:[#allocation8 + $0x3e8] sm:$0xff]
    %v260 = vld [vmem:[#allocation8 + $0x3f0] sm:$0xff]
    %v261 = vld [vmem:[#allocation8 + $0x3f8] sm:$0xff]
    %v262 = vld [vmem:[#allocation10] sm:$0xff]
    %v263 = vld [vmem:[#allocation10 + $0x8] sm:$0xff]
    %v264 = vld [vmem:[#allocation10 + $0x10] sm:$0xff]
    %v265 = vld [vmem:[#allocation10 + $0x18] sm:$0xff]
    %v266 = vld [vmem:[#allocation10 + $0x20] sm:$0xff]
    %v267 = vld [vmem:[#allocation10 + $0x28] sm:$0xff]
    %v268 = vld [vmem:[#allocation10 + $0x30] sm:$0xff]
    %v269 = vld [vmem:[#allocation10 + $0x38] sm:$0xff]
    %v270 = vld [vmem:[#allocation10 + $0x40] sm:$0xff]
    %v271 = vld [vmem:[#allocation10 + $0x48] sm:$0xff]
    %v272 = vld [vmem:[#allocation10 + $0x50] sm:$0xff]
    %v273 = vld [vmem:[#allocation10 + $0x58] sm:$0xff]
    %v274 = vld [vmem:[#allocation10 + $0x60] sm:$0xff]
    %v275 = vld [vmem:[#allocation10 + $0x68] sm:$0xff]
    %v276 = vld [vmem:[#allocation10 + $0x70] sm:$0xff]
    %v277 = vld [vmem:[#allocation10 + $0x78] sm:$0xff]
    %v278 = vld [vmem:[#allocation10 + $0x80] sm:$0xff]
    %v279 = vld [vmem:[#allocation10 + $0x88] sm:$0xff]
    %v280 = vld [vmem:[#allocation10 + $0x90] sm:$0xff]
    %v281 = vld [vmem:[#allocation10 + $0x98] sm:$0xff]
    %v282 = vld [vmem:[#allocation10 + $0xa0] sm:$0xff]
    %v283 = vld [vmem:[#allocation10 + $0xa8] sm:$0xff]
    %v284 = vld [vmem:[#allocation10 + $0xb0] sm:$0xff]
    %v285 = vld [vmem:[#allocation10 + $0xb8] sm:$0xff]
    %v286 = vld [vmem:[#allocation10 + $0xc0] sm:$0xff]
    %v287 = vld [vmem:[#allocation10 + $0xc8] sm:$0xff]
    %v288 = vld [vmem:[#allocation10 + $0xd0] sm:$0xff]
    %v289 = vld [vmem:[#allocation10 + $0xd8] sm:$0xff]
    %v290 = vld [vmem:[#allocation10 + $0xe0] sm:$0xff]
    %v291 = vld [vmem:[#allocation10 + $0xe8] sm:$0xff]
    %v292 = vld [vmem:[#allocation10 + $0xf0] sm:$0xff]
    %v293 = vld [vmem:[#allocation10 + $0xf8] sm:$0xff]
    %v294 = vld [vmem:[#allocation10 + $0x100] sm:$0xff]
    %v295 = vld [vmem:[#allocation10 + $0x108] sm:$0xff]
    %v296 = vld [vmem:[#allocation10 + $0x110] sm:$0xff]
    %v297 = vld [vmem:[#allocation10 + $0x118] sm:$0xff]
    %v298 = vld [vmem:[#allocation10 + $0x120] sm:$0xff]
    %v299 = vld [vmem:[#allocation10 + $0x128] sm:$0xff]
    %v300 = vld [vmem:[#allocation10 + $0x130] sm:$0xff]
    %v301 = vld [vmem:[#allocation10 + $0x138] sm:$0xff]
    %v302 = vld [vmem:[#allocation10 + $0x140] sm:$0xff]
    %v303 = vld [vmem:[#allocation10 + $0x148] sm:$0xff]
    %v304 = vld [vmem:[#allocation10 + $0x150] sm:$0xff]
    %v305 = vld [vmem:[#allocation10 + $0x158] sm:$0xff]
    %v306 = vld [vmem:[#allocation10 + $0x160] sm:$0xff]
    %v307 = vld [vmem:[#allocation10 + $0x168] sm:$0xff]
    %v308 = vld [vmem:[#allocation10 + $0x170] sm:$0xff]
    %v309 = vld [vmem:[#allocation10 + $0x178] sm:$0xff]
    %v310 = vld [vmem:[#allocation10 + $0x180] sm:$0xff]
    %v311 = vld [vmem:[#allocation10 + $0x188] sm:$0xff]
    %v312 = vld [vmem:[#allocation10 + $0x190] sm:$0xff]
    %v313 = vld [vmem:[#allocation10 + $0x198] sm:$0xff]
    %v314 = vld [vmem:[#allocation10 + $0x1a0] sm:$0xff]
    %v315 = vld [vmem:[#allocation10 + $0x1a8] sm:$0xff]
    %v316 = vld [vmem:[#allocation10 + $0x1b0] sm:$0xff]
    %v317 = vld [vmem:[#allocation10 + $0x1b8] sm:$0xff]
    %v318 = vld [vmem:[#allocation10 + $0x1c0] sm:$0xff]
    %v319 = vld [vmem:[#allocation10 + $0x1c8] sm:$0xff]
    %v320 = vld [vmem:[#allocation10 + $0x1d0] sm:$0xff]
    %v321 = vld [vmem:[#allocation10 + $0x1d8] sm:$0xff]
    %v322 = vld [vmem:[#allocation10 + $0x1e0] sm:$0xff]
    %v323 = vld [vmem:[#allocation10 + $0x1e8] sm:$0xff]
    %v324 = vld [vmem:[#allocation10 + $0x1f0] sm:$0xff]
    %v325 = vld [vmem:[#allocation10 + $0x1f8] sm:$0xff]
    %v326 = vld [vmem:[#allocation11] sm:$0xff]
    %v327 = vld [vmem:[#allocation11 + $0x8] sm:$0xff]
    %v328 = vld [vmem:[#allocation11 + $0x10] sm:$0xff]
    %v329 = vld [vmem:[#allocation11 + $0x18] sm:$0xff]
    %v330 = vld [vmem:[#allocation11 + $0x20] sm:$0xff]
    %v331 = vld [vmem:[#allocation11 + $0x28] sm:$0xff]
    %v332 = vld [vmem:[#allocation11 + $0x30] sm:$0xff]
    %v333 = vld [vmem:[#allocation11 + $0x38] sm:$0xff]
    %v334 = vld [vmem:[#allocation11 + $0x40] sm:$0xff]
    %v335 = vld [vmem:[#allocation11 + $0x48] sm:$0xff]
    %v336 = vld [vmem:[#allocation11 + $0x50] sm:$0xff]
    %v337 = vld [vmem:[#allocation11 + $0x58] sm:$0xff]
    %v338 = vld [vmem:[#allocation11 + $0x60] sm:$0xff]
    %v339 = vld [vmem:[#allocation11 + $0x68] sm:$0xff]
    %v340 = vld [vmem:[#allocation11 + $0x70] sm:$0xff]
    %v341 = vld [vmem:[#allocation11 + $0x78] sm:$0xff]
    %v342 = vld [vmem:[#allocation11 + $0x80] sm:$0xff]
    %v343 = vld [vmem:[#allocation11 + $0x88] sm:$0xff]
    %v344 = vld [vmem:[#allocation11 + $0x90] sm:$0xff]
    %v345 = vld [vmem:[#allocation11 + $0x98] sm:$0xff]
    %v346 = vld [vmem:[#allocation11 + $0xa0] sm:$0xff]
    %v347 = vld [vmem:[#allocation11 + $0xa8] sm:$0xff]
    %v348 = vld [vmem:[#allocation11 + $0xb0] sm:$0xff]
    %v349 = vld [vmem:[#allocation11 + $0xb8] sm:$0xff]
    %v350 = vld [vmem:[#allocation11 + $0xc0] sm:$0xff]
    %v351 = vld [vmem:[#allocation11 + $0xc8] sm:$0xff]
    %v352 = vld [vmem:[#allocation11 + $0xd0] sm:$0xff]
    %v353 = vld [vmem:[#allocation11 + $0xd8] sm:$0xff]
    %v354 = vld [vmem:[#allocation11 + $0xe0] sm:$0xff]
    %v355 = vld [vmem:[#allocation11 + $0xe8] sm:$0xff]
    %v356 = vld [vmem:[#allocation11 + $0xf0] sm:$0xff]
    %v357 = vld [vmem:[#allocation11 + $0xf8] sm:$0xff]
    %v358 = vld [vmem:[#allocation13] sm:$0xff]
    %v359 = vld [vmem:[#allocation13 + $0x8] sm:$0xff]
    %v360 = vld [vmem:[#allocation13 + $0x10] sm:$0xff]
    %v361 = vld [vmem:[#allocation13 + $0x18] sm:$0xff]
    %v362 = vld [vmem:[#allocation13 + $0x20] sm:$0xff]
    %v363 = vld [vmem:[#allocation13 + $0x28] sm:$0xff]
    %v364 = vld [vmem:[#allocation13 + $0x30] sm:$0xff]
    %v365 = vld [vmem:[#allocation13 + $0x38] sm:$0xff]
    %v366 = vld [vmem:[#allocation13 + $0x40] sm:$0xff]
    %v367 = vld [vmem:[#allocation13 + $0x48] sm:$0xff]
    %v368 = vld [vmem:[#allocation13 + $0x50] sm:$0xff]
    %v369 = vld [vmem:[#allocation13 + $0x58] sm:$0xff]
    %v370 = vld [vmem:[#allocation13 + $0x60] sm:$0xff]
    %v371 = vld [vmem:[#allocation13 + $0x68] sm:$0xff]
    %v372 = vld [vmem:[#allocation13 + $0x70] sm:$0xff]
    %v373 = vld [vmem:[#allocation13 + $0x78] sm:$0xff]
    %v374 = vld [vmem:[#allocation2] sm:$0xff]
    %v375 = vld [vmem:[#allocation2 + $0x8] sm:$0xff]
    %v376 = vld [vmem:[#allocation5] sm:$0xff]
    %v377 = vld [vmem:[#allocation7] sm:$0xff]
    %378 = vmatprep.subr.mxu0 %v263
    %379 = vmatpush1.msra.mxu0 %v262
    %380 = vmatprep.subr.mxu0 %v267
    %381 = vmatpush1.msra.mxu0 %v266
    %382 = vmatprep.subr.mxu0 %v271
    %383 = vmatpush1.msra.mxu0 %v270
    %384 = vmatprep.subr.mxu0 %v275
    %385 = vmatpush1.msra.mxu0 %v274
    %386 = vmatprep.subr.mxu0 %v279
    %387 = vmatpush1.msra.mxu0 %v278
    %388 = vmatprep.subr.mxu0 %v283
    %389 = vmatpush1.msra.mxu0 %v282
    %390 = vmatprep.subr.mxu0 %v287
    %391 = vmatpush1.msra.mxu0 %v286
    %392 = vmatprep.subr.mxu0 %v291
    %393 = vmatpush1.msra.mxu0 %v290
    %394 = vmatprep.subr.mxu0 %v295
    %395 = vmatpush1.msra.mxu0 %v294
    %396 = vmatprep.subr.mxu0 %v299
    %397 = vmatpush1.msra.mxu0 %v298
    %398 = vmatprep.subr.mxu0 %v303
    %399 = vmatpush1.msra.mxu0 %v302
    %400 = vmatprep.subr.mxu0 %v307
    %401 = vmatpush1.msra.mxu0 %v306
    %402 = vmatprep.subr.mxu0 %v311
    %403 = vmatpush1.msra.mxu0 %v310
    %404 = vmatprep.subr.mxu0 %v315
    %405 = vmatpush1.msra.mxu0 %v314
    %406 = vmatprep.subr.mxu0 %v319
    %407 = vmatpush1.msra.mxu0 %v318
    %408 = vmatprep.subr.mxu0 %v323
    %409 = vmatpush1.msra.mxu0 %v322
    %410 = vmatprep.subr.mxu0 0.0
    %411 = vmatpush1.msra.mxu0 0.0
    %412 = vmatprep.subr.mxu0 0.0
    %413 = vmatpush1.msra.mxu0 0.0
    %414 = vmatprep.subr.mxu0 0.0
    %415 = vmatpush1.msra.mxu0 0.0
    %416 = vmatprep.subr.mxu0 0.0
    %417 = vmatpush1.msra.mxu0 0.0
    %418 = vmatprep.subr.mxu0 0.0
    %419 = vmatpush1.msra.mxu0 0.0
    %420 = vmatprep.subr.mxu0 0.0
    %421 = vmatpush1.msra.mxu0 0.0
    %422 = vmatprep.subr.mxu0 0.0
    %423 = vmatpush1.msra.mxu0 0.0
    %424 = vmatprep.subr.mxu0 0.0
    %425 = vmatpush1.msra.mxu0 0.0
    %426 = vmatprep.subr.mxu0 0.0
    %427 = vmatpush1.msra.mxu0 0.0
    %428 = vmatprep.subr.mxu0 0.0
    %429 = vmatpush1.msra.mxu0 0.0
    %430 = vmatprep.subr.mxu0 0.0
    %431 = vmatpush1.msra.mxu0 0.0
    %432 = vmatprep.subr.mxu0 0.0
    %433 = vmatpush1.msra.mxu0 0.0
    %434 = vmatprep.subr.mxu0 0.0
    %435 = vmatpush1.msra.mxu0 0.0
    %436 = vmatprep.subr.mxu0 0.0
    %437 = vmatpush1.msra.mxu0 0.0
    %438 = vmatprep.subr.mxu0 0.0
    %439 = vmatpush1.msra.mxu0 0.0
    %440 = vmatprep.subr.mxu0 0.0
    %441 = vmatpush1.msra.mxu0 0.0
    %442 = vmatprep.mubr.f32.mxu0 0.0
    %443 = vmatmul.mubr.f32.gmra.mrb[0].mxu0 %v376
    %v444 = vpop.f32.mrb[0].mxu0
    %v445 = vadd.f32 0.0, %v444
    %v446 = vpop.f32.mrb[0].mxu0
    %v447 = vadd.f32 0.0, %v446
    %448 = vdwg.mxu0
    %449 = vmatprep.subr.mxu0 %v265
    %450 = vmatpush1.msra.mxu0 %v264
    %451 = vmatprep.subr.mxu0 %v269
    %452 = vmatpush1.msra.mxu0 %v268
    %453 = vmatprep.subr.mxu0 %v273
    %454 = vmatpush1.msra.mxu0 %v272
    %455 = vmatprep.subr.mxu0 %v277
    %456 = vmatpush1.msra.mxu0 %v276
    %457 = vmatprep.subr.mxu0 %v281
    %458 = vmatpush1.msra.mxu0 %v280
    %459 = vmatprep.subr.mxu0 %v285
    %460 = vmatpush1.msra.mxu0 %v284
    %461 = vmatprep.subr.mxu0 %v289
    %462 = vmatpush1.msra.mxu0 %v288
    %463 = vmatprep.subr.mxu0 %v293
    %464 = vmatpush1.msra.mxu0 %v292
    %465 = vmatprep.subr.mxu0 %v297
    %466 = vmatpush1.msra.mxu0 %v296
    %467 = vmatprep.subr.mxu0 %v301
    %468 = vmatpush1.msra.mxu0 %v300
    %469 = vmatprep.subr.mxu0 %v305
    %470 = vmatpush1.msra.mxu0 %v304
    %471 = vmatprep.subr.mxu0 %v309
    %472 = vmatpush1.msra.mxu0 %v308
    %473 = vmatprep.subr.mxu0 %v313
    %474 = vmatpush1.msra.mxu0 %v312
    %475 = vmatprep.subr.mxu0 %v317
    %476 = vmatpush1.msra.mxu0 %v316
    %477 = vmatprep.subr.mxu0 %v321
    %478 = vmatpush1.msra.mxu0 %v320
    %479 = vmatprep.subr.mxu0 %v325
    %480 = vmatpush1.msra.mxu0 %v324
    %481 = vmatprep.subr.mxu0 0.0
    %482 = vmatpush1.msra.mxu0 0.0
    %483 = vmatprep.subr.mxu0 0.0
    %484 = vmatpush1.msra.mxu0 0.0
    %485 = vmatprep.subr.mxu0 0.0
    %486 = vmatpush1.msra.mxu0 0.0
    %487 = vmatprep.subr.mxu0 0.0
    %488 = vmatpush1.msra.mxu0 0.0
    %489 = vmatprep.subr.mxu0 0.0
    %490 = vmatpush1.msra.mxu0 0.0
    %491 = vmatprep.subr.mxu0 0.0
    %492 = vmatpush1.msra.mxu0 0.0
    %493 = vmatprep.subr.mxu0 0.0
    %494 = vmatpush1.msra.mxu0 0.0
    %495 = vmatprep.subr.mxu0 0.0
    %496 = vmatpush1.msra.mxu0 0.0
    %497 = vmatprep.subr.mxu0 0.0
    %498 = vmatpush1.msra.mxu0 0.0
    %499 = vmatprep.subr.mxu0 0.0
    %500 = vmatpush1.msra.mxu0 0.0
    %501 = vmatprep.subr.mxu0 0.0
    %502 = vmatpush1.msra.mxu0 0.0
    %503 = vmatprep.subr.mxu0 0.0
    %504 = vmatpush1.msra.mxu0 0.0
    %505 = vmatprep.subr.mxu0 0.0
    %506 = vmatpush1.msra.mxu0 0.0
    %507 = vmatprep.subr.mxu0 0.0
    %508 = vmatpush1.msra.mxu0 0.0
    %509 = vmatprep.subr.mxu0 0.0
    %510 = vmatpush1.msra.mxu0 0.0
    %511 = vmatprep.subr.mxu0 0.0
    %512 = vmatpush1.msra.mxu0 0.0
    %513 = vmatprep.mubr.f32.mxu0 0.0
    %514 = vmatmul.mubr.f32.gmra.mrb[0].mxu0 %v376
    %v515 = vpop.f32.mrb[0].mxu0
    %v516 = vadd.f32 0.0, %v515
    %v517 = vpop.f32.mrb[0].mxu0
    %v518 = vadd.f32 0.0, %v517
    %519 = vdwg.mxu0
    %520 = vmatprep.subr.mxu0 %v135
    %521 = vmatpush1.msra.mxu0 %v134
    %522 = vmatprep.subr.mxu0 %v139
    %523 = vmatpush1.msra.mxu0 %v138
    %524 = vmatprep.subr.mxu0 %v143
    %525 = vmatpush1.msra.mxu0 %v142
    %526 = vmatprep.subr.mxu0 %v147
    %527 = vmatpush1.msra.mxu0 %v146
    %528 = vmatprep.subr.mxu0 %v151
    %529 = vmatpush1.msra.mxu0 %v150
    %530 = vmatprep.subr.mxu0 %v155
    %531 = vmatpush1.msra.mxu0 %v154
    %532 = vmatprep.subr.mxu0 %v159
    %533 = vmatpush1.msra.mxu0 %v158
    %534 = vmatprep.subr.mxu0 %v163
    %535 = vmatpush1.msra.mxu0 %v162
    %536 = vmatprep.subr.mxu0 %v167
    %537 = vmatpush1.msra.mxu0 %v166
    %538 = vmatprep.subr.mxu0 %v171
    %539 = vmatpush1.msra.mxu0 %v170
    %540 = vmatprep.subr.mxu0 %v175
    %541 = vmatpush1.msra.mxu0 %v174
    %542 = vmatprep.subr.mxu0 %v179
    %543 = vmatpush1.msra.mxu0 %v178
    %544 = vmatprep.subr.mxu0 %v183
    %545 = vmatpush1.msra.mxu0 %v182
    %546 = vmatprep.subr.mxu0 %v187
    %547 = vmatpush1.msra.mxu0 %v186
    %548 = vmatprep.subr.mxu0 %v191
    %549 = vmatpush1.msra.mxu0 %v190
    %550 = vmatprep.subr.mxu0 %v195
    %551 = vmatpush1.msra.mxu0 %v194
    %552 = vmatprep.subr.mxu0 %v199
    %553 = vmatpush1.msra.mxu0 %v198
    %554 = vmatprep.subr.mxu0 %v203
    %555 = vmatpush1.msra.mxu0 %v202
    %556 = vmatprep.subr.mxu0 %v207
    %557 = vmatpush1.msra.mxu0 %v206
    %558 = vmatprep.subr.mxu0 %v211
    %559 = vmatpush1.msra.mxu0 %v210
    %560 = vmatprep.subr.mxu0 %v215
    %561 = vmatpush1.msra.mxu0 %v214
    %562 = vmatprep.subr.mxu0 %v219
    %563 = vmatpush1.msra.mxu0 %v218
    %564 = vmatprep.subr.mxu0 %v223
    %565 = vmatpush1.msra.mxu0 %v222
    %566 = vmatprep.subr.mxu0 %v227
    %567 = vmatpush1.msra.mxu0 %v226
    %568 = vmatprep.subr.mxu0 %v231
    %569 = vmatpush1.msra.mxu0 %v230
    %570 = vmatprep.subr.mxu0 %v235
    %571 = vmatpush1.msra.mxu0 %v234
    %572 = vmatprep.subr.mxu0 %v239
    %573 = vmatpush1.msra.mxu0 %v238
    %574 = vmatprep.subr.mxu0 %v243
    %575 = vmatpush1.msra.mxu0 %v242
    %576 = vmatprep.subr.mxu0 %v247
    %577 = vmatpush1.msra.mxu0 %v246
    %578 = vmatprep.subr.mxu0 %v251
    %579 = vmatpush1.msra.mxu0 %v250
    %580 = vmatprep.subr.mxu0 %v255
    %581 = vmatpush1.msra.mxu0 %v254
    %582 = vmatprep.subr.mxu0 %v259
    %583 = vmatpush1.msra.mxu0 %v258
    %584 = vmatprep.mubr.f32.mxu0 %v375
    %585 = vmatmul.mubr.f32.gmra.mrb[0].mxu0 %v374
    %v586 = vpop.f32.mrb[0].mxu0
    %v587 = vadd.f32 %v445, %v586
    %v588 = vpop.f32.mrb[0].mxu0
    %v589 = vadd.f32 %v447, %v588
    %590 = vdwg.mxu0
    %591 = vmatprep.subr.mxu0 %v137
    %592 = vmatpush1.msra.mxu0 %v136
    %593 = vmatprep.subr.mxu0 %v141
    %594 = vmatpush1.msra.mxu0 %v140
    %595 = vmatprep.subr.mxu0 %v145
    %596 = vmatpush1.msra.mxu0 %v144
    %597 = vmatprep.subr.mxu0 %v149
    %598 = vmatpush1.msra.mxu0 %v148
    %599 = vmatprep.subr.mxu0 %v153
    %600 = vmatpush1.msra.mxu0 %v152
    %601 = vmatprep.subr.mxu0 %v157
    %602 = vmatpush1.msra.mxu0 %v156
    %603 = vmatprep.subr.mxu0 %v161
    %604 = vmatpush1.msra.mxu0 %v160
    %605 = vmatprep.subr.mxu0 %v165
    %606 = vmatpush1.msra.mxu0 %v164
    %607 = vmatprep.subr.mxu0 %v169
    %608 = vmatpush1.msra.mxu0 %v168
    %609 = vmatprep.subr.mxu0 %v173
    %610 = vmatpush1.msra.mxu0 %v172
    %611 = vmatprep.subr.mxu0 %v177
    %612 = vmatpush1.msra.mxu0 %v176
    %613 = vmatprep.subr.mxu0 %v181
    %614 = vmatpush1.msra.mxu0 %v180
    %615 = vmatprep.subr.mxu0 %v185
    %616 = vmatpush1.msra.mxu0 %v184
    %617 = vmatprep.subr.mxu0 %v189
    %618 = vmatpush1.msra.mxu0 %v188
    %619 = vmatprep.subr.mxu0 %v193
    %620 = vmatpush1.msra.mxu0 %v192
    %621 = vmatprep.subr.mxu0 %v197
    %622 = vmatpush1.msra.mxu0 %v196
    %623 = vmatprep.subr.mxu0 %v201
    %624 = vmatpush1.msra.mxu0 %v200
    %625 = vmatprep.subr.mxu0 %v205
    %626 = vmatpush1.msra.mxu0 %v204
    %627 = vmatprep.subr.mxu0 %v209
    %628 = vmatpush1.msra.mxu0 %v208
    %629 = vmatprep.subr.mxu0 %v213
    %630 = vmatpush1.msra.mxu0 %v212
    %631 = vmatprep.subr.mxu0 %v217
    %632 = vmatpush1.msra.mxu0 %v216
    %633 = vmatprep.subr.mxu0 %v221
    %634 = vmatpush1.msra.mxu0 %v220
    %635 = vmatprep.subr.mxu0 %v225
    %636 = vmatpush1.msra.mxu0 %v224
    %637 = vmatprep.subr.mxu0 %v229
    %638 = vmatpush1.msra.mxu0 %v228
    %639 = vmatprep.subr.mxu0 %v233
    %640 = vmatpush1.msra.mxu0 %v232
    %641 = vmatprep.subr.mxu0 %v237
    %642 = vmatpush1.msra.mxu0 %v236
    %643 = vmatprep.subr.mxu0 %v241
    %644 = vmatpush1.msra.mxu0 %v240
    %645 = vmatprep.subr.mxu0 %v245
    %646 = vmatpush1.msra.mxu0 %v244
    %647 = vmatprep.subr.mxu0 %v249
    %648 = vmatpush1.msra.mxu0 %v248
    %649 = vmatprep.subr.mxu0 %v253
    %650 = vmatpush1.msra.mxu0 %v252
    %651 = vmatprep.subr.mxu0 %v257
    %652 = vmatpush1.msra.mxu0 %v256
    %653 = vmatprep.subr.mxu0 %v261
    %654 = vmatpush1.msra.mxu0 %v260
    %655 = vmatprep.mubr.f32.mxu0 %v375
    %656 = vmatmul.mubr.f32.gmra.mrb[0].mxu0 %v374
    %v657 = vpop.f32.mrb[0].mxu0
    %v658 = vadd.f32 %v516, %v657
    %v659 = vpop.f32.mrb[0].mxu0
    %v660 = vadd.f32 %v518, %v659
    %661 = vdwg.mxu0
    %v662 = vld [vmem:[#allocation14] sm:$0xf]
    %v664 = vlaneseq
    %v665 = vshrl.u32 %v664, 7
    %v666 = vsub.s32 0, %v665
    %v667 = vrot.slane %v662, %v666
    %v668 = vlaneseq
    %v669 = vshrl.u32 %v668, 7
    %v670 = vsub.s32 1, %v669
    %v671 = vrot.slane %v662, %v670
    %v672 = vlaneseq
    %v673 = vshrl.u32 %v672, 7
    %v674 = vsub.s32 2, %v673
    %v675 = vrot.slane %v662, %v674
    %v676 = vlaneseq
    %v677 = vshrl.u32 %v676, 7
    %v678 = vsub.s32 3, %v677
    %v679 = vrot.slane %v662, %v678
    %v684 = vadd.f32 %v587, %v667
    %v685 = vadd.f32 %v589, %v671
    %v686 = vadd.f32 %v658, %v675
    %v687 = vadd.f32 %v660, %v679
    %688 = vmatprep.subr.mxu0 %v327
    %689 = vmatpush1.msra.mxu0 %v326
    %690 = vmatprep.subr.mxu0 %v329
    %691 = vmatpush1.msra.mxu0 %v328
    %692 = vmatprep.subr.mxu0 %v331
    %693 = vmatpush1.msra.mxu0 %v330
    %694 = vmatprep.subr.mxu0 %v333
    %695 = vmatpush1.msra.mxu0 %v332
    %696 = vmatprep.subr.mxu0 %v335
    %697 = vmatpush1.msra.mxu0 %v334
    %698 = vmatprep.subr.mxu0 %v337
    %699 = vmatpush1.msra.mxu0 %v336
    %700 = vmatprep.subr.mxu0 %v339
    %701 = vmatpush1.msra.mxu0 %v338
    %702 = vmatprep.subr.mxu0 %v341
    %703 = vmatpush1.msra.mxu0 %v340
    %704 = vmatprep.subr.mxu0 %v343
    %705 = vmatpush1.msra.mxu0 %v342
    %706 = vmatprep.subr.mxu0 %v345
    %707 = vmatpush1.msra.mxu0 %v344
    %708 = vmatprep.subr.mxu0 %v347
    %709 = vmatpush1.msra.mxu0 %v346
    %710 = vmatprep.subr.mxu0 %v349
    %711 = vmatpush1.msra.mxu0 %v348
    %712 = vmatprep.subr.mxu0 %v351
    %713 = vmatpush1.msra.mxu0 %v350
    %714 = vmatprep.subr.mxu0 %v353
    %715 = vmatpush1.msra.mxu0 %v352
    %716 = vmatprep.subr.mxu0 %v355
    %717 = vmatpush1.msra.mxu0 %v354
    %718 = vmatprep.subr.mxu0 %v357
    %719 = vmatpush1.msra.mxu0 %v356
    %720 = vmatprep.subr.mxu0 0.0
    %721 = vmatpush1.msra.mxu0 0.0
    %722 = vmatprep.subr.mxu0 0.0
    %723 = vmatpush1.msra.mxu0 0.0
    %724 = vmatprep.subr.mxu0 0.0
    %725 = vmatpush1.msra.mxu0 0.0
    %726 = vmatprep.subr.mxu0 0.0
    %727 = vmatpush1.msra.mxu0 0.0
    %728 = vmatprep.subr.mxu0 0.0
    %729 = vmatpush1.msra.mxu0 0.0
    %730 = vmatprep.subr.mxu0 0.0
    %731 = vmatpush1.msra.mxu0 0.0
    %732 = vmatprep.subr.mxu0 0.0
    %733 = vmatpush1.msra.mxu0 0.0
    %734 = vmatprep.subr.mxu0 0.0
    %735 = vmatpush1.msra.mxu0 0.0
    %736 = vmatprep.subr.mxu0 0.0
    %737 = vmatpush1.msra.mxu0 0.0
    %738 = vmatprep.subr.mxu0 0.0
    %739 = vmatpush1.msra.mxu0 0.0
    %740 = vmatprep.subr.mxu0 0.0
    %741 = vmatpush1.msra.mxu0 0.0
    %742 = vmatprep.subr.mxu0 0.0
    %743 = vmatpush1.msra.mxu0 0.0
    %744 = vmatprep.subr.mxu0 0.0
    %745 = vmatpush1.msra.mxu0 0.0
    %746 = vmatprep.subr.mxu0 0.0
    %747 = vmatpush1.msra.mxu0 0.0
    %748 = vmatprep.subr.mxu0 0.0
    %749 = vmatpush1.msra.mxu0 0.0
    %750 = vmatprep.subr.mxu0 0.0
    %751 = vmatpush1.msra.mxu0 0.0
    %752 = vmatprep.mubr.f32.mxu0 0.0
    %753 = vmatmul.mubr.f32.gmra.mrb[0].mxu0 %v377
    %v754 = vpop.f32.mrb[0].mxu0
    %v755 = vadd.f32 0.0, %v754
    %v756 = vpop.f32.mrb[0].mxu0
    %v757 = vadd.f32 0.0, %v756
    %758 = vdwg.mxu0
    %v759 = vadd.f32 %v684, %v755
    %v760 = vsub.f32 0.0, %v759
    %v761 = vmul.f32 %v760, 1.442695
    %v762 = vpow.pop %v761
    %v763 = vadd.f32 %v762, 1.0
    %v764 = vrcp.pop %v763
    %v765 = vadd.f32 %v685, %v757
    %v766 = vsub.f32 0.0, %v765
    %v767 = vmul.f32 %v766, 1.442695
    %v768 = vpow.pop %v767
    %v769 = vadd.f32 %v768, 1.0
    %v770 = vrcp.pop %v769
    %v771 = vtanh.pop %v686
    %v772 = vmul.f32 %v770, %v377
    %v773 = vmul.f32 %v764, %v771
    %v774 = vadd.f32 %v772, %v773
    %775 = vmatprep.subr.mxu0 0.0
    %776 = vmatpush1.msra.mxu0 %v358
    %777 = vmatprep.subr.mxu0 0.0
    %778 = vmatpush1.msra.mxu0 %v359
    %779 = vmatprep.subr.mxu0 0.0
    %780 = vmatpush1.msra.mxu0 %v360
    %781 = vmatprep.subr.mxu0 0.0
    %782 = vmatpush1.msra.mxu0 %v361
    %783 = vmatprep.subr.mxu0 0.0
    %784 = vmatpush1.msra.mxu0 %v362
    %785 = vmatprep.subr.mxu0 0.0
    %786 = vmatpush1.msra.mxu0 %v363
    %787 = vmatprep.subr.mxu0 0.0
    %788 = vmatpush1.msra.mxu0 %v364
    %789 = vmatprep.subr.mxu0 0.0
    %790 = vmatpush1.msra.mxu0 %v365
    %791 = vmatprep.subr.mxu0 0.0
    %792 = vmatpush1.msra.mxu0 %v366
    %793 = vmatprep.subr.mxu0 0.0
    %794 = vmatpush1.msra.mxu0 %v367
    %795 = vmatprep.subr.mxu0 0.0
    %796 = vmatpush1.msra.mxu0 %v368
    %797 = vmatprep.subr.mxu0 0.0
    %798 = vmatpush1.msra.mxu0 %v369
    %799 = vmatprep.subr.mxu0 0.0
    %800 = vmatpush1.msra.mxu0 %v370
    %801 = vmatprep.subr.mxu0 0.0
    %802 = vmatpush1.msra.mxu0 %v371
    %803 = vmatprep.subr.mxu0 0.0
    %804 = vmatpush1.msra.mxu0 %v372
    %805 = vmatprep.subr.mxu0 0.0
    %806 = vmatpush1.msra.mxu0 %v373
    %807 = vmatprep.subr.mxu0 0.0
    %808 = vmatpush1.msra.mxu0 0.0
    %809 = vmatprep.subr.mxu0 0.0
    %810 = vmatpush1.msra.mxu0 0.0
    %811 = vmatprep.subr.mxu0 0.0
    %812 = vmatpush1.msra.mxu0 0.0
    %813 = vmatprep.subr.mxu0 0.0
    %814 = vmatpush1.msra.mxu0 0.0
    %815 = vmatprep.subr.mxu0 0.0
    %816 = vmatpush1.msra.mxu0 0.0
    %817 = vmatprep.subr.mxu0 0.0
    %818 = vmatpush1.msra.mxu0 0.0
    %819 = vmatprep.subr.mxu0 0.0
    %820 = vmatpush1.msra.mxu0 0.0
    %821 = vmatprep.subr.mxu0 0.0
    %822 = vmatpush1.msra.mxu0 0.0
    %823 = vmatprep.subr.mxu0 0.0
    %824 = vmatpush1.msra.mxu0 0.0
    %825 = vmatprep.subr.mxu0 0.0
    %826 = vmatpush1.msra.mxu0 0.0
    %827 = vmatprep.subr.mxu0 0.0
    %828 = vmatpush1.msra.mxu0 0.0
    %829 = vmatprep.subr.mxu0 0.0
    %830 = vmatpush1.msra.mxu0 0.0
    %831 = vmatprep.subr.mxu0 0.0
    %832 = vmatpush1.msra.mxu0 0.0
    %833 = vmatprep.subr.mxu0 0.0
    %834 = vmatpush1.msra.mxu0 0.0
    %835 = vmatprep.subr.mxu0 0.0
    %836 = vmatpush1.msra.mxu0 0.0
    %837 = vmatprep.subr.mxu0 0.0
    %838 = vmatpush1.msra.mxu0 0.0
    %839 = vmatprep.mubr.f32.mxu0 0.0
    %840 = vmatmul.mubr.f32.gmra.mrb[0].mxu0 %v774
    %v841 = vpop.f32.mrb[0].mxu0
    %v842 = vadd.f32 0.0, %v841
    %v843 = vpop.f32.mrb[0].mxu0
    %844 = vdwg.mxu0
    %v845 = vadd.f32 %v687, %v842
    %v846 = vsub.f32 0.0, %v845
    %v847 = vmul.f32 %v846, 1.442695
    %v848 = vpow.pop %v847
    %v849 = vadd.f32 %v848, 1.0
    %v850 = vrcp.pop %v849
    %v851 = vmul.f32 %v850, %v774
    %852 = vst [vmem:[#allocation16] sm:$0xff] %v851
    %853 = vst [vmem:[#allocation17] sm:$0xff] %v774
    // Predicated region
    $region66: #{tpu_custom_call.1} parent=1 // pred_check
      _
    $region67: #{tpu_custom_call.1} parent=1 // pred_check_branch
      %855 = sbr.rel (0) target = $region69
    $region68: #{tpu_custom_call.1} parent=1 // pred_region
      %s857 = ssub.s32 128, 128
      %858 = vsyncadd [#allocation4], %s857
      %s860 = sshll.u32 [#allocation16], 4
      %s861 = int_to_ptr.vmem [resolvable:$true] %s860
      %863 = dma.vmem_to_hbm [thread:$0]  %s861, 128, %s8, [#allocation4]
    $region69: #{tpu_custom_call.1} parent=1 // pred_fallthru
      _
    // Predicated region
    $region70: #{tpu_custom_call.1} parent=1 // pred_check
      _
    $region71: #{tpu_custom_call.1} parent=1 // pred_check_branch
      %865 = sbr.rel (0) target = $region73
    $region72: #{tpu_custom_call.1} parent=1 // pred_region
      %s867 = ssub.s32 128, 128
      %868 = vsyncadd [#allocation18], %s867
      %s870 = sshll.u32 [#allocation17], 4
      %s871 = int_to_ptr.vmem [resolvable:$true] %s870
      %873 = dma.vmem_to_hbm [thread:$0]  %s871, 128, %s9, [#allocation18]
    $region73: #{tpu_custom_call.1} parent=1 // pred_fallthru
      _
    // Predicated region
    $region74: #{tpu_custom_call.1} parent=1 // pred_check
      _
    $region75: #{tpu_custom_call.1} parent=1 // pred_check_branch
      %875 = sbr.rel (0) target = $region77
    $region76: #{tpu_custom_call.1} parent=1 // pred_region
      %876 = dma.done [#allocation4], 128
    $region77: #{tpu_custom_call.1} parent=1 // pred_fallthru
      _
    // Predicated region
    $region78: #{tpu_custom_call.1} parent=1 // pred_check
      _
    $region79: #{tpu_custom_call.1} parent=1 // pred_check_branch
      %878 = sbr.rel (0) target = $region81
    $region80: #{tpu_custom_call.1} parent=1 // pred_region
      %879 = dma.done [#allocation18], 128
    $region81: #{tpu_custom_call.1} parent=1 // pred_fallthru
      _
    %880 = vsyncpa [#allocation3], 1
    %881 = vsyncpa [#allocation6], 1
    %882 = vsyncpa [#allocation9], 1
    %883 = vsyncpa [#allocation12], 1
    %884 = vsyncpa [#allocation15], 1
    %885 = vsyncpa [#allocation4], 1
    %886 = vsyncpa [#allocation18], 1

</llo_original>
